<compile_context>
chip_gen: v7x
topology: tpu7x:2x2x1
jax: 0.10.0
libtpu: 0.0.40
codegen_flags: <defaults>
</compile_context>

<pallas_src>
import numpy as np
import jax
import jax.numpy as jnp
from jax import lax
from jax.experimental import pallas as pl
from jax.experimental.pallas import tpu as pltpu


# ----------------------------- Pallas kernel --------------------------------
def _make_kernel(T, B_pad, B_real, H, O_pad):
    n_valid = float(T * B_real)
    H2, H4, H8 = 2 * H, 4 * H, 8 * H

    def sig(x):
        # sigmoid via tanh identity: one EUP push instead of exp + reciprocal.
        return 0.5 * jnp.tanh(0.5 * x) + 0.5

    def kernel(x2d_ref, w0e_ref, biase_ref, wblk_ref,
               fc2w_ref, fc2b_ref, gamma_ref, beta_ref, out_ref):
        # Hoisted layer-0 input projection over ALL timesteps (one GEMM, f32):
        # columns are gate-interleaved [i0 i1 f0 f1 g0 g1 o0 o1]; layer biases
        # (b0 | b1) are folded in here so the loop has no bias broadcasts.
        xpb = (jnp.dot(x2d_ref[...], w0e_ref[...],
                       preferred_element_type=jnp.float32)
               + biase_ref[...])                       # (T*B_pad, 8H) f32

        wblk = wblk_ref[...]                           # (2H, 8H) bf16 block RHS
        fc2w = fc2w_ref[...]                           # (H, O_pad) f32
        fc2b = jnp.broadcast_to(fc2b_ref[...], (B_pad, O_pad))   # hoisted

        # Packed states: lanes 0:H = layer 0, lanes H:2H = layer 1.
        h_cat = jnp.zeros((B_pad, H2), jnp.float32)
        c_cat = jnp.zeros((B_pad, H2), jnp.float32)
        rec = jnp.zeros((B_pad, H8), jnp.float32)
        lane2h = lax.broadcasted_iota(jnp.int32, (1, H2), 1)
        l0mask = (lane2h < H).astype(jnp.float32)      # keeps only layer-0 half

        for t in range(T):        # static unroll; T is a compile-time constant
            # pre(t): layer-0 gate columns are for timestep t, layer-1 gate
            # columns are for timestep t-1 (one-step wavefront).
            pre = xpb[t * B_pad:(t + 1) * B_pad, :] + rec      # (B_pad, 8H)
            sg = sig(pre)
            i_cat = sg[:, 0:H2]
            f_cat = sg[:, H2:H4]
            g_cat = jnp.tanh(pre[:, H4:3 * H2])
            o_cat = sg[:, 3 * H2:H8]
            c_cat = f_cat * c_cat + i_cat * g_cat
            h_cat = o_cat * jnp.tanh(c_cat)            # [h0(t) | h1(t-1)]
            if t == 0:
                # h1(-1) = c1(-1) = 0: discard the layer-1 half produced from
                # the meaningless bias-only pre at the first step.
                h_cat = h_cat * l0mask
                c_cat = c_cat * l0mask
            else:
                # Layer-1 output for step t-1 is ready -> fc2 (off the serial
                # chain, hidden under the next step's MXU latency); store the
                # raw y rows lane-dense.  Row layout: row = t*B_pad + b.
                h1 = h_cat[:, H:H2]
                y = (jnp.dot(h1, fc2w, preferred_element_type=jnp.float32)
                     + fc2b)
                out_ref[(t - 1) * B_pad:t * B_pad, :] = y

            # Fused recurrent matmul — the only op on the serial critical path:
            # [h0(t) | h1(t-1)] @ [[Whh0, Wih1],[0, Whh1]] (gate-interleaved).
            rec = jnp.dot(h_cat.astype(jnp.bfloat16), wblk,
                          preferred_element_type=jnp.float32)

        # ---- flush: layer-1 update for the final timestep T-1 ----
        pre_last = rec + biase_ref[...]
        i1 = sig(pre_last[:, H:H2])
        f1 = sig(pre_last[:, 3 * H:H4])
        g1 = jnp.tanh(pre_last[:, 5 * H:3 * H2])
        o1 = sig(pre_last[:, 7 * H:H8])
        c1 = f1 * c_cat[:, H:H2] + i1 * g1
        h1 = o1 * jnp.tanh(c1)
        y = jnp.dot(h1, fc2w, preferred_element_type=jnp.float32) + fc2b
        out_ref[(T - 1) * B_pad:T * B_pad, :] = y

        # ---- BatchNorm1d (training stats over valid rows) + ReLU ----
        # Invariant: out rows are (t, b)-ordered with b = row % B_pad; padded
        # batch rows (b >= B_real) are masked out of the statistics.
        yall = out_ref[...]                            # (T*B_pad, O_pad) f32
        row_b = lax.broadcasted_iota(jnp.int32, (T * B_pad, 1), 0) % B_pad
        mask = (row_b < B_real).astype(jnp.float32)
        mean = jnp.sum(yall * mask, axis=0, keepdims=True) / n_valid
        d = (yall - mean) * mask
        var = jnp.sum(d * d, axis=0, keepdims=True) / n_valid   # biased, 2-pass
        yhat = (yall - mean) * lax.rsqrt(var + 1e-5) * gamma_ref[...] + beta_ref[...]
        out_ref[...] = jnp.maximum(yhat, 0.0)          # lane-dense final store

    return kernel


# ------------------------------ Wrapper --------------------------------------
def lstm_model_forward(x, p):
    """x: (B, T, D) batch_first, float32. Returns (B*T, O) like the torch module."""
    B, T, D = x.shape
    H = p["whh0_t"].shape[0]
    O = p["fc2_w_t"].shape[1]
    H4 = 4 * H

    B_pad = ((B + 7) // 8) * 8                 # pad batch to 8-sublane tile
    O_pad = ((O + 127) // 128) * 128           # lane-dense output slab

    # time-major, zero-pad batch, flatten to (T*B_pad, D)
    x_tm = jnp.transpose(x, (1, 0, 2)).astype(jnp.float32)       # (T, B, D)
    if B_pad != B:
        x_tm = jnp.pad(x_tm, ((0, 0), (0, B_pad - B), (0, 0)))
    x2d = x_tm.reshape(T * B_pad, D)

    def interleave(m0, m1):
        # two [i|f|g|o] blocks (each 4H wide) -> [i0 i1 f0 f1 g0 g1 o0 o1]
        parts = []
        for g in range(4):
            parts.append(m0[..., g * H:(g + 1) * H])
            parts.append(m1[..., g * H:(g + 1) * H])
        return jnp.concatenate(parts, axis=-1)

    zD = jnp.zeros((D, H4), jnp.float32)
    zH = jnp.zeros((H, H4), jnp.float32)
    # Hoisted input-projection weights (x feeds only layer-0 gate columns).
    w0e = interleave(p["wih0_t"], zD)                              # (D, 8H) f32
    bias_e = interleave(p["b0"], p["b1"])                          # (1, 8H) f32
    # Block RHS for the fused one-step-wavefront recurrence (bf16).
    w_blk = jnp.concatenate(
        [interleave(p["whh0_t"], p["wih1_t"]),     # rows driven by h0(t)
         interleave(zH, p["whh1_t"])],             # rows driven by h1(t-1)
        axis=0).astype(jnp.bfloat16)                               # (2H, 8H)

    pad_o = ((0, 0), (0, O_pad - O))
    fc2w = jnp.pad(p["fc2_w_t"], pad_o)
    fc2b = jnp.pad(p["fc2_b"], pad_o)
    gamma = jnp.pad(p["bn2_gamma"], pad_o)
    beta = jnp.pad(p["bn2_beta"], pad_o)

    kernel = _make_kernel(T, B_pad, B, H, O_pad)
    vmem = lambda: pl.BlockSpec(memory_space=pltpu.MemorySpace.VMEM)
    out2d = pl.pallas_call(
        kernel,
        out_shape=jax.ShapeDtypeStruct((T * B_pad, O_pad), jnp.float32),
        in_specs=[vmem() for _ in range(8)],
        out_specs=vmem(),
    )(x2d, w0e, bias_e, w_blk, fc2w, fc2b, gamma, beta)

    # (T*B_pad, O_pad) -> drop padding -> PyTorch's flattened batch_first order.
    out = out2d.reshape(T, B_pad, O_pad)[:, :B, :O]      # (T, B, O)
    return jnp.transpose(out, (1, 0, 2)).reshape(B * T, O)


# --------------------------- Deterministic params ----------------------------
def init_params(key, D, H, O):
    ks = jax.random.split(key, 12)
    s = 1.0 / np.sqrt(H)
    u = lambda k, shp, sc: jax.random.uniform(k, shp, jnp.float32, -sc, sc)

    wih0 = u(ks[0], (4 * H, D), s); whh0 = u(ks[1], (4 * H, H), s)
    bih0 = u(ks[2], (4 * H,), s);   bhh0 = u(ks[3], (4 * H,), s)
    wih1 = u(ks[4], (4 * H, H), s); whh1 = u(ks[5], (4 * H, H), s)
    bih1 = u(ks[6], (4 * H,), s);   bhh1 = u(ks[7], (4 * H,), s)
    fc2_w = u(ks[8], (O, H), s);    fc2_b = u(ks[9], (O,), s)
    gamma = 1.0 + 0.1 * jax.random.normal(ks[10], (O,), jnp.float32)
    beta = 0.1 * jax.random.normal(ks[11], (O,), jnp.float32)
    # fc1 / bn1 parameters exist in the torch module but their branch is dead code.

    return {
        "wih0_t": wih0.T, "whh0_t": whh0.T, "b0": (bih0 + bhh0).reshape(1, 4 * H),
        "wih1_t": wih1.T, "whh1_t": whh1.T, "b1": (bih1 + bhh1).reshape(1, 4 * H),
        "fc2_w_t": fc2_w.T, "fc2_b": fc2_b.reshape(1, O),
        "bn2_gamma": gamma.reshape(1, O), "bn2_beta": beta.reshape(1, O),
    }


# ----------------------------- Pure-JAX reference ----------------------------
def reference_forward(x, p):
    B, T, D = x.shape
    H = p["whh0_t"].shape[0]

    def gate_split(pre):
        i = jax.nn.sigmoid(pre[:, 0 * H:1 * H])
        f = jax.nn.sigmoid(pre[:, 1 * H:2 * H])
        g = jnp.tanh(pre[:, 2 * H:3 * H])
        o = jax.nn.sigmoid(pre[:, 3 * H:4 * H])
        return i, f, g, o

    h0 = c0 = h1 = c1 = jnp.zeros((B, H), jnp.float32)
    outs = []
    for t in range(T):
        x_t = x[:, t, :]
        i, f, g, o = gate_split(x_t @ p["wih0_t"] + h0 @ p["whh0_t"] + p["b0"])
        c0 = f * c0 + i * g
        h0 = o * jnp.tanh(c0)
        i, f, g, o = gate_split(h0 @ p["wih1_t"] + h1 @ p["whh1_t"] + p["b1"])
        c1 = f * c1 + i * g
        h1 = o * jnp.tanh(c1)
        outs.append(h1)
    lstm_out = jnp.stack(outs, axis=1)                     # (B, T, H)
    z = lstm_out.reshape(B * T, H)
    y = z @ p["fc2_w_t"] + p["fc2_b"]
    mean = jnp.mean(y, axis=0, keepdims=True)
    var = jnp.mean((y - mean) ** 2, axis=0, keepdims=True)  # biased variance
    y = (y - mean) / jnp.sqrt(var + 1e-5) * p["bn2_gamma"] + p["bn2_beta"]
    return jnp.maximum(y, 0.0)


# --------------------------------- Main ---------------------------------------
if __name__ == "__main__":
    # Small shapes consistent with the module's forward:
    # batch=4, seq=8, input_size=16, hidden_size=32, output_size=8, num_layers=2
    B, T, D, H, O = 4, 8, 16, 32, 8

    key = jax.random.PRNGKey(0)
    k_x, k_p = jax.random.split(key)
    x = jax.random.normal(k_x, (B, T, D), jnp.float32)
    params = init_params(k_p, D, H, O)

    fwd = jax.jit(lstm_model_forward)          # fuses wrapper-side prep/epilogue
    out = jax.block_until_ready(fwd(x, params))
    ref = jax.block_until_ready(reference_forward(x, params))

    assert out.shape == (B * T, O), out.shape
    np.testing.assert_allclose(np.asarray(out), np.asarray(ref), rtol=2e-2, atol=2e-2)
    print("KERNEL_OK")
</pallas_src>

<mosaic_0001>
module attributes {stable_mosaic.version = 11 : i64} {
  func.func @kernel(%arg0: memref<64x16xf32, #tpu.memory_space<vmem>>, %arg1: memref<16x256xf32, #tpu.memory_space<vmem>>, %arg2: memref<1x256xf32, #tpu.memory_space<vmem>>, %arg3: memref<64x256xbf16, #tpu.memory_space<vmem>>, %arg4: memref<32x128xf32, #tpu.memory_space<vmem>>, %arg5: memref<1x128xf32, #tpu.memory_space<vmem>>, %arg6: memref<1x128xf32, #tpu.memory_space<vmem>>, %arg7: memref<1x128xf32, #tpu.memory_space<vmem>>, %arg8: memref<64x128xf32, #tpu.memory_space<vmem>>) attributes {dimension_semantics = [], scalar_prefetch = 0 : i64, scratch_operands = 0 : i64, tpu.core_type = #tpu.core_type<tc>} {
    %c0 = arith.constant 0 : index
    %c0_0 = arith.constant 0 : index
    %0 = vector.load %arg0[%c0, %c0_0] : memref<64x16xf32, #tpu.memory_space<vmem>>, vector<64x16xf32>
    %c0_1 = arith.constant 0 : index
    %c0_2 = arith.constant 0 : index
    %1 = vector.load %arg1[%c0_1, %c0_2] : memref<16x256xf32, #tpu.memory_space<vmem>>, vector<16x256xf32>
    %cst = arith.constant dense<0.000000e+00> : vector<64x256xf32>
    %2 = tpu.matmul %0, %1, %cst {dimension_numbers = #tpu.dot_dimension_numbers<[1], [0], [0], [1], [0, 0, 1, 1], [], []>} : vector<64x16xf32>, vector<16x256xf32>, vector<64x256xf32> -> vector<64x256xf32>
    %c0_3 = arith.constant 0 : index
    %c0_4 = arith.constant 0 : index
    %3 = vector.load %arg2[%c0_3, %c0_4] : memref<1x256xf32, #tpu.memory_space<vmem>>, vector<1x256xf32>
    %4 = vector.broadcast %3 : vector<1x256xf32> to vector<64x256xf32>
    %5 = arith.addf %2, %4 : vector<64x256xf32>
    %c0_5 = arith.constant 0 : index
    %c0_6 = arith.constant 0 : index
    %6 = vector.load %arg3[%c0_5, %c0_6] : memref<64x256xbf16, #tpu.memory_space<vmem>>, vector<64x256xbf16>
    %c0_7 = arith.constant 0 : index
    %c0_8 = arith.constant 0 : index
    %7 = vector.load %arg4[%c0_7, %c0_8] : memref<32x128xf32, #tpu.memory_space<vmem>>, vector<32x128xf32>
    %c0_9 = arith.constant 0 : index
    %c0_10 = arith.constant 0 : index
    %8 = vector.load %arg5[%c0_9, %c0_10] : memref<1x128xf32, #tpu.memory_space<vmem>>, vector<1x128xf32>
    %9 = vector.shape_cast %8 : vector<1x128xf32> to vector<1x128xf32>
    %10 = vector.broadcast %9 : vector<1x128xf32> to vector<8x128xf32>
    %cst_11 = arith.constant 0.000000e+00 : f32
    %11 = vector.broadcast %cst_11 : f32 to vector<8x64xf32>
    %cst_12 = arith.constant 0.000000e+00 : f32
    %12 = vector.broadcast %cst_12 : f32 to vector<8x256xf32>
    %13 = tpu.iota {dimensions = array<i32: 1>} : vector<1x64xi32>
    %c32_i32 = arith.constant 32 : i32
    %14 = vector.broadcast %c32_i32 : i32 to vector<1x64xi32>
    %15 = arith.cmpi slt, %13, %14 : vector<1x64xi32>
    %16 = arith.extui %15 : vector<1x64xi1> to vector<1x64xi32>
    %17 = arith.sitofp %16 : vector<1x64xi32> to vector<1x64xf32>
    %18 = vector.extract_strided_slice %5 {offsets = [0, 0], sizes = [8, 256], strides = [1, 1]} : vector<64x256xf32> to vector<8x256xf32>
    %19 = arith.addf %18, %12 : vector<8x256xf32>
    %cst_13 = arith.constant 5.000000e-01 : f32
    %20 = vector.broadcast %cst_13 : f32 to vector<8x256xf32>
    %21 = arith.mulf %20, %19 : vector<8x256xf32>
    %22 = math.tanh %21 : vector<8x256xf32>
    %cst_14 = arith.constant 5.000000e-01 : f32
    %23 = vector.broadcast %cst_14 : f32 to vector<8x256xf32>
    %24 = arith.mulf %23, %22 : vector<8x256xf32>
    %cst_15 = arith.constant 5.000000e-01 : f32
    %25 = vector.broadcast %cst_15 : f32 to vector<8x256xf32>
    %26 = arith.addf %24, %25 : vector<8x256xf32>
    %27 = vector.extract_strided_slice %26 {offsets = [0, 0], sizes = [8, 64], strides = [1, 1]} : vector<8x256xf32> to vector<8x64xf32>
    %28 = vector.extract_strided_slice %26 {offsets = [0, 64], sizes = [8, 64], strides = [1, 1]} : vector<8x256xf32> to vector<8x64xf32>
    %29 = vector.extract_strided_slice %19 {offsets = [0, 128], sizes = [8, 64], strides = [1, 1]} : vector<8x256xf32> to vector<8x64xf32>
    %30 = math.tanh %29 : vector<8x64xf32>
    %31 = vector.extract_strided_slice %26 {offsets = [0, 192], sizes = [8, 64], strides = [1, 1]} : vector<8x256xf32> to vector<8x64xf32>
    %32 = arith.mulf %28, %11 : vector<8x64xf32>
    %33 = arith.mulf %27, %30 : vector<8x64xf32>
    %34 = arith.addf %32, %33 : vector<8x64xf32>
    %35 = math.tanh %34 : vector<8x64xf32>
    %36 = arith.mulf %31, %35 : vector<8x64xf32>
    %37 = vector.broadcast %17 : vector<1x64xf32> to vector<8x64xf32>
    %38 = arith.mulf %36, %37 : vector<8x64xf32>
    %39 = vector.broadcast %17 : vector<1x64xf32> to vector<8x64xf32>
    %40 = arith.mulf %34, %39 : vector<8x64xf32>
    %41 = arith.truncf %38 : vector<8x64xf32> to vector<8x64xbf16>
    %cst_16 = arith.constant dense<0.000000e+00> : vector<8x256xf32>
    %42 = tpu.matmul %41, %6, %cst_16 {dimension_numbers = #tpu.dot_dimension_numbers<[1], [0], [0], [1], [0, 0, 1, 1], [], []>} : vector<8x64xbf16>, vector<64x256xbf16>, vector<8x256xf32> -> vector<8x256xf32>
    %43 = vector.extract_strided_slice %5 {offsets = [8, 0], sizes = [8, 256], strides = [1, 1]} : vector<64x256xf32> to vector<8x256xf32>
    %44 = arith.addf %43, %42 : vector<8x256xf32>
    %cst_17 = arith.constant 5.000000e-01 : f32
    %45 = vector.broadcast %cst_17 : f32 to vector<8x256xf32>
    %46 = arith.mulf %45, %44 : vector<8x256xf32>
    %47 = math.tanh %46 : vector<8x256xf32>
    %cst_18 = arith.constant 5.000000e-01 : f32
    %48 = vector.broadcast %cst_18 : f32 to vector<8x256xf32>
    %49 = arith.mulf %48, %47 : vector<8x256xf32>
    %cst_19 = arith.constant 5.000000e-01 : f32
    %50 = vector.broadcast %cst_19 : f32 to vector<8x256xf32>
    %51 = arith.addf %49, %50 : vector<8x256xf32>
    %52 = vector.extract_strided_slice %51 {offsets = [0, 0], sizes = [8, 64], strides = [1, 1]} : vector<8x256xf32> to vector<8x64xf32>
    %53 = vector.extract_strided_slice %51 {offsets = [0, 64], sizes = [8, 64], strides = [1, 1]} : vector<8x256xf32> to vector<8x64xf32>
    %54 = vector.extract_strided_slice %44 {offsets = [0, 128], sizes = [8, 64], strides = [1, 1]} : vector<8x256xf32> to vector<8x64xf32>
    %55 = math.tanh %54 : vector<8x64xf32>
    %56 = vector.extract_strided_slice %51 {offsets = [0, 192], sizes = [8, 64], strides = [1, 1]} : vector<8x256xf32> to vector<8x64xf32>
    %57 = arith.mulf %53, %40 : vector<8x64xf32>
    %58 = arith.mulf %52, %55 : vector<8x64xf32>
    %59 = arith.addf %57, %58 : vector<8x64xf32>
    %60 = math.tanh %59 : vector<8x64xf32>
    %61 = arith.mulf %56, %60 : vector<8x64xf32>
    %62 = vector.extract_strided_slice %61 {offsets = [0, 32], sizes = [8, 32], strides = [1, 1]} : vector<8x64xf32> to vector<8x32xf32>
    %cst_20 = arith.constant dense<0.000000e+00> : vector<8x128xf32>
    %63 = tpu.matmul %62, %7, %cst_20 {dimension_numbers = #tpu.dot_dimension_numbers<[1], [0], [0], [1], [0, 0, 1, 1], [], []>} : vector<8x32xf32>, vector<32x128xf32>, vector<8x128xf32> -> vector<8x128xf32>
    %64 = arith.addf %63, %10 : vector<8x128xf32>
    %c0_21 = arith.constant 0 : index
    %c0_22 = arith.constant 0 : index
    %65 = vector.load %arg8[%c0_21, %c0_22] : memref<64x128xf32, #tpu.memory_space<vmem>>, vector<8x128xf32>
    tpu.vector_store %arg8[%c0_21, %c0_22], %64 {strides = array<i32>} : memref<64x128xf32, #tpu.memory_space<vmem>>, vector<8x128xf32>,
    %66 = arith.truncf %61 : vector<8x64xf32> to vector<8x64xbf16>
    %cst_23 = arith.constant dense<0.000000e+00> : vector<8x256xf32>
    %67 = tpu.matmul %66, %6, %cst_23 {dimension_numbers = #tpu.dot_dimension_numbers<[1], [0], [0], [1], [0, 0, 1, 1], [], []>} : vector<8x64xbf16>, vector<64x256xbf16>, vector<8x256xf32> -> vector<8x256xf32>
    %68 = vector.extract_strided_slice %5 {offsets = [16, 0], sizes = [8, 256], strides = [1, 1]} : vector<64x256xf32> to vector<8x256xf32>
    %69 = arith.addf %68, %67 : vector<8x256xf32>
    %cst_24 = arith.constant 5.000000e-01 : f32
    %70 = vector.broadcast %cst_24 : f32 to vector<8x256xf32>
    %71 = arith.mulf %70, %69 : vector<8x256xf32>
    %72 = math.tanh %71 : vector<8x256xf32>
    %cst_25 = arith.constant 5.000000e-01 : f32
    %73 = vector.broadcast %cst_25 : f32 to vector<8x256xf32>
    %74 = arith.mulf %73, %72 : vector<8x256xf32>
    %cst_26 = arith.constant 5.000000e-01 : f32
    %75 = vector.broadcast %cst_26 : f32 to vector<8x256xf32>
    %76 = arith.addf %74, %75 : vector<8x256xf32>
    %77 = vector.extract_strided_slice %76 {offsets = [0, 0], sizes = [8, 64], strides = [1, 1]} : vector<8x256xf32> to vector<8x64xf32>
    %78 = vector.extract_strided_slice %76 {offsets = [0, 64], sizes = [8, 64], strides = [1, 1]} : vector<8x256xf32> to vector<8x64xf32>
    %79 = vector.extract_strided_slice %69 {offsets = [0, 128], sizes = [8, 64], strides = [1, 1]} : vector<8x256xf32> to vector<8x64xf32>
    %80 = math.tanh %79 : vector<8x64xf32>
    %81 = vector.extract_strided_slice %76 {offsets = [0, 192], sizes = [8, 64], strides = [1, 1]} : vector<8x256xf32> to vector<8x64xf32>
    %82 = arith.mulf %78, %59 : vector<8x64xf32>
    %83 = arith.mulf %77, %80 : vector<8x64xf32>
    %84 = arith.addf %82, %83 : vector<8x64xf32>
    %85 = math.tanh %84 : vector<8x64xf32>
    %86 = arith.mulf %81, %85 : vector<8x64xf32>
    %87 = vector.extract_strided_slice %86 {offsets = [0, 32], sizes = [8, 32], strides = [1, 1]} : vector<8x64xf32> to vector<8x32xf32>
    %cst_27 = arith.constant dense<0.000000e+00> : vector<8x128xf32>
    %88 = tpu.matmul %87, %7, %cst_27 {dimension_numbers = #tpu.dot_dimension_numbers<[1], [0], [0], [1], [0, 0, 1, 1], [], []>} : vector<8x32xf32>, vector<32x128xf32>, vector<8x128xf32> -> vector<8x128xf32>
    %89 = arith.addf %88, %10 : vector<8x128xf32>
    %c8 = arith.constant 8 : index
    %c0_28 = arith.constant 0 : index
    %90 = vector.load %arg8[%c8, %c0_28] : memref<64x128xf32, #tpu.memory_space<vmem>>, vector<8x128xf32>
    tpu.vector_store %arg8[%c8, %c0_28], %89 {strides = array<i32>} : memref<64x128xf32, #tpu.memory_space<vmem>>, vector<8x128xf32>,
    %91 = arith.truncf %86 : vector<8x64xf32> to vector<8x64xbf16>
    %cst_29 = arith.constant dense<0.000000e+00> : vector<8x256xf32>
    %92 = tpu.matmul %91, %6, %cst_29 {dimension_numbers = #tpu.dot_dimension_numbers<[1], [0], [0], [1], [0, 0, 1, 1], [], []>} : vector<8x64xbf16>, vector<64x256xbf16>, vector<8x256xf32> -> vector<8x256xf32>
    %93 = vector.extract_strided_slice %5 {offsets = [24, 0], sizes = [8, 256], strides = [1, 1]} : vector<64x256xf32> to vector<8x256xf32>
    %94 = arith.addf %93, %92 : vector<8x256xf32>
    %cst_30 = arith.constant 5.000000e-01 : f32
    %95 = vector.broadcast %cst_30 : f32 to vector<8x256xf32>
    %96 = arith.mulf %95, %94 : vector<8x256xf32>
    %97 = math.tanh %96 : vector<8x256xf32>
    %cst_31 = arith.constant 5.000000e-01 : f32
    %98 = vector.broadcast %cst_31 : f32 to vector<8x256xf32>
    %99 = arith.mulf %98, %97 : vector<8x256xf32>
    %cst_32 = arith.constant 5.000000e-01 : f32
    %100 = vector.broadcast %cst_32 : f32 to vector<8x256xf32>
    %101 = arith.addf %99, %100 : vector<8x256xf32>
    %102 = vector.extract_strided_slice %101 {offsets = [0, 0], sizes = [8, 64], strides = [1, 1]} : vector<8x256xf32> to vector<8x64xf32>
    %103 = vector.extract_strided_slice %101 {offsets = [0, 64], sizes = [8, 64], strides = [1, 1]} : vector<8x256xf32> to vector<8x64xf32>
    %104 = vector.extract_strided_slice %94 {offsets = [0, 128], sizes = [8, 64], strides = [1, 1]} : vector<8x256xf32> to vector<8x64xf32>
    %105 = math.tanh %104 : vector<8x64xf32>
    %106 = vector.extract_strided_slice %101 {offsets = [0, 192], sizes = [8, 64], strides = [1, 1]} : vector<8x256xf32> to vector<8x64xf32>
    %107 = arith.mulf %103, %84 : vector<8x64xf32>
    %108 = arith.mulf %102, %105 : vector<8x64xf32>
    %109 = arith.addf %107, %108 : vector<8x64xf32>
    %110 = math.tanh %109 : vector<8x64xf32>
    %111 = arith.mulf %106, %110 : vector<8x64xf32>
    %112 = vector.extract_strided_slice %111 {offsets = [0, 32], sizes = [8, 32], strides = [1, 1]} : vector<8x64xf32> to vector<8x32xf32>
    %cst_33 = arith.constant dense<0.000000e+00> : vector<8x128xf32>
    %113 = tpu.matmul %112, %7, %cst_33 {dimension_numbers = #tpu.dot_dimension_numbers<[1], [0], [0], [1], [0, 0, 1, 1], [], []>} : vector<8x32xf32>, vector<32x128xf32>, vector<8x128xf32> -> vector<8x128xf32>
    %114 = arith.addf %113, %10 : vector<8x128xf32>
    %c16 = arith.constant 16 : index
    %c0_34 = arith.constant 0 : index
    %115 = vector.load %arg8[%c16, %c0_34] : memref<64x128xf32, #tpu.memory_space<vmem>>, vector<8x128xf32>
    tpu.vector_store %arg8[%c16, %c0_34], %114 {strides = array<i32>} : memref<64x128xf32, #tpu.memory_space<vmem>>, vector<8x128xf32>,
    %116 = arith.truncf %111 : vector<8x64xf32> to vector<8x64xbf16>
    %cst_35 = arith.constant dense<0.000000e+00> : vector<8x256xf32>
    %117 = tpu.matmul %116, %6, %cst_35 {dimension_numbers = #tpu.dot_dimension_numbers<[1], [0], [0], [1], [0, 0, 1, 1], [], []>} : vector<8x64xbf16>, vector<64x256xbf16>, vector<8x256xf32> -> vector<8x256xf32>
    %118 = vector.extract_strided_slice %5 {offsets = [32, 0], sizes = [8, 256], strides = [1, 1]} : vector<64x256xf32> to vector<8x256xf32>
    %119 = arith.addf %118, %117 : vector<8x256xf32>
    %cst_36 = arith.constant 5.000000e-01 : f32
    %120 = vector.broadcast %cst_36 : f32 to vector<8x256xf32>
    %121 = arith.mulf %120, %119 : vector<8x256xf32>
    %122 = math.tanh %121 : vector<8x256xf32>
    %cst_37 = arith.constant 5.000000e-01 : f32
    %123 = vector.broadcast %cst_37 : f32 to vector<8x256xf32>
    %124 = arith.mulf %123, %122 : vector<8x256xf32>
    %cst_38 = arith.constant 5.000000e-01 : f32
    %125 = vector.broadcast %cst_38 : f32 to vector<8x256xf32>
    %126 = arith.addf %124, %125 : vector<8x256xf32>
    %127 = vector.extract_strided_slice %126 {offsets = [0, 0], sizes = [8, 64], strides = [1, 1]} : vector<8x256xf32> to vector<8x64xf32>
    %128 = vector.extract_strided_slice %126 {offsets = [0, 64], sizes = [8, 64], strides = [1, 1]} : vector<8x256xf32> to vector<8x64xf32>
    %129 = vector.extract_strided_slice %119 {offsets = [0, 128], sizes = [8, 64], strides = [1, 1]} : vector<8x256xf32> to vector<8x64xf32>
    %130 = math.tanh %129 : vector<8x64xf32>
    %131 = vector.extract_strided_slice %126 {offsets = [0, 192], sizes = [8, 64], strides = [1, 1]} : vector<8x256xf32> to vector<8x64xf32>
    %132 = arith.mulf %128, %109 : vector<8x64xf32>
    %133 = arith.mulf %127, %130 : vector<8x64xf32>
    %134 = arith.addf %132, %133 : vector<8x64xf32>
    %135 = math.tanh %134 : vector<8x64xf32>
    %136 = arith.mulf %131, %135 : vector<8x64xf32>
    %137 = vector.extract_strided_slice %136 {offsets = [0, 32], sizes = [8, 32], strides = [1, 1]} : vector<8x64xf32> to vector<8x32xf32>
    %cst_39 = arith.constant dense<0.000000e+00> : vector<8x128xf32>
    %138 = tpu.matmul %137, %7, %cst_39 {dimension_numbers = #tpu.dot_dimension_numbers<[1], [0], [0], [1], [0, 0, 1, 1], [], []>} : vector<8x32xf32>, vector<32x128xf32>, vector<8x128xf32> -> vector<8x128xf32>
    %139 = arith.addf %138, %10 : vector<8x128xf32>
    %c24 = arith.constant 24 : index
    %c0_40 = arith.constant 0 : index
    %140 = vector.load %arg8[%c24, %c0_40] : memref<64x128xf32, #tpu.memory_space<vmem>>, vector<8x128xf32>
    tpu.vector_store %arg8[%c24, %c0_40], %139 {strides = array<i32>} : memref<64x128xf32, #tpu.memory_space<vmem>>, vector<8x128xf32>,
    %141 = arith.truncf %136 : vector<8x64xf32> to vector<8x64xbf16>
    %cst_41 = arith.constant dense<0.000000e+00> : vector<8x256xf32>
    %142 = tpu.matmul %141, %6, %cst_41 {dimension_numbers = #tpu.dot_dimension_numbers<[1], [0], [0], [1], [0, 0, 1, 1], [], []>} : vector<8x64xbf16>, vector<64x256xbf16>, vector<8x256xf32> -> vector<8x256xf32>
    %143 = vector.extract_strided_slice %5 {offsets = [40, 0], sizes = [8, 256], strides = [1, 1]} : vector<64x256xf32> to vector<8x256xf32>
    %144 = arith.addf %143, %142 : vector<8x256xf32>
    %cst_42 = arith.constant 5.000000e-01 : f32
    %145 = vector.broadcast %cst_42 : f32 to vector<8x256xf32>
    %146 = arith.mulf %145, %144 : vector<8x256xf32>
    %147 = math.tanh %146 : vector<8x256xf32>
    %cst_43 = arith.constant 5.000000e-01 : f32
    %148 = vector.broadcast %cst_43 : f32 to vector<8x256xf32>
    %149 = arith.mulf %148, %147 : vector<8x256xf32>
    %cst_44 = arith.constant 5.000000e-01 : f32
    %150 = vector.broadcast %cst_44 : f32 to vector<8x256xf32>
    %151 = arith.addf %149, %150 : vector<8x256xf32>
    %152 = vector.extract_strided_slice %151 {offsets = [0, 0], sizes = [8, 64], strides = [1, 1]} : vector<8x256xf32> to vector<8x64xf32>
    %153 = vector.extract_strided_slice %151 {offsets = [0, 64], sizes = [8, 64], strides = [1, 1]} : vector<8x256xf32> to vector<8x64xf32>
    %154 = vector.extract_strided_slice %144 {offsets = [0, 128], sizes = [8, 64], strides = [1, 1]} : vector<8x256xf32> to vector<8x64xf32>
    %155 = math.tanh %154 : vector<8x64xf32>
    %156 = vector.extract_strided_slice %151 {offsets = [0, 192], sizes = [8, 64], strides = [1, 1]} : vector<8x256xf32> to vector<8x64xf32>
    %157 = arith.mulf %153, %134 : vector<8x64xf32>
    %158 = arith.mulf %152, %155 : vector<8x64xf32>
    %159 = arith.addf %157, %158 : vector<8x64xf32>
    %160 = math.tanh %159 : vector<8x64xf32>
    %161 = arith.mulf %156, %160 : vector<8x64xf32>
    %162 = vector.extract_strided_slice %161 {offsets = [0, 32], sizes = [8, 32], strides = [1, 1]} : vector<8x64xf32> to vector<8x32xf32>
    %cst_45 = arith.constant dense<0.000000e+00> : vector<8x128xf32>
    %163 = tpu.matmul %162, %7, %cst_45 {dimension_numbers = #tpu.dot_dimension_numbers<[1], [0], [0], [1], [0, 0, 1, 1], [], []>} : vector<8x32xf32>, vector<32x128xf32>, vector<8x128xf32> -> vector<8x128xf32>
    %164 = arith.addf %163, %10 : vector<8x128xf32>
    %c32 = arith.constant 32 : index
    %c0_46 = arith.constant 0 : index
    %165 = vector.load %arg8[%c32, %c0_46] : memref<64x128xf32, #tpu.memory_space<vmem>>, vector<8x128xf32>
    tpu.vector_store %arg8[%c32, %c0_46], %164 {strides = array<i32>} : memref<64x128xf32, #tpu.memory_space<vmem>>, vector<8x128xf32>,
    %166 = arith.truncf %161 : vector<8x64xf32> to vector<8x64xbf16>
    %cst_47 = arith.constant dense<0.000000e+00> : vector<8x256xf32>
    %167 = tpu.matmul %166, %6, %cst_47 {dimension_numbers = #tpu.dot_dimension_numbers<[1], [0], [0], [1], [0, 0, 1, 1], [], []>} : vector<8x64xbf16>, vector<64x256xbf16>, vector<8x256xf32> -> vector<8x256xf32>
    %168 = vector.extract_strided_slice %5 {offsets = [48, 0], sizes = [8, 256], strides = [1, 1]} : vector<64x256xf32> to vector<8x256xf32>
    %169 = arith.addf %168, %167 : vector<8x256xf32>
    %cst_48 = arith.constant 5.000000e-01 : f32
    %170 = vector.broadcast %cst_48 : f32 to vector<8x256xf32>
    %171 = arith.mulf %170, %169 : vector<8x256xf32>
    %172 = math.tanh %171 : vector<8x256xf32>
    %cst_49 = arith.constant 5.000000e-01 : f32
    %173 = vector.broadcast %cst_49 : f32 to vector<8x256xf32>
    %174 = arith.mulf %173, %172 : vector<8x256xf32>
    %cst_50 = arith.constant 5.000000e-01 : f32
    %175 = vector.broadcast %cst_50 : f32 to vector<8x256xf32>
    %176 = arith.addf %174, %175 : vector<8x256xf32>
    %177 = vector.extract_strided_slice %176 {offsets = [0, 0], sizes = [8, 64], strides = [1, 1]} : vector<8x256xf32> to vector<8x64xf32>
    %178 = vector.extract_strided_slice %176 {offsets = [0, 64], sizes = [8, 64], strides = [1, 1]} : vector<8x256xf32> to vector<8x64xf32>
    %179 = vector.extract_strided_slice %169 {offsets = [0, 128], sizes = [8, 64], strides = [1, 1]} : vector<8x256xf32> to vector<8x64xf32>
    %180 = math.tanh %179 : vector<8x64xf32>
    %181 = vector.extract_strided_slice %176 {offsets = [0, 192], sizes = [8, 64], strides = [1, 1]} : vector<8x256xf32> to vector<8x64xf32>
    %182 = arith.mulf %178, %159 : vector<8x64xf32>
    %183 = arith.mulf %177, %180 : vector<8x64xf32>
    %184 = arith.addf %182, %183 : vector<8x64xf32>
    %185 = math.tanh %184 : vector<8x64xf32>
    %186 = arith.mulf %181, %185 : vector<8x64xf32>
    %187 = vector.extract_strided_slice %186 {offsets = [0, 32], sizes = [8, 32], strides = [1, 1]} : vector<8x64xf32> to vector<8x32xf32>
    %cst_51 = arith.constant dense<0.000000e+00> : vector<8x128xf32>
    %188 = tpu.matmul %187, %7, %cst_51 {dimension_numbers = #tpu.dot_dimension_numbers<[1], [0], [0], [1], [0, 0, 1, 1], [], []>} : vector<8x32xf32>, vector<32x128xf32>, vector<8x128xf32> -> vector<8x128xf32>
    %189 = arith.addf %188, %10 : vector<8x128xf32>
    %c40 = arith.constant 40 : index
    %c0_52 = arith.constant 0 : index
    %190 = vector.load %arg8[%c40, %c0_52] : memref<64x128xf32, #tpu.memory_space<vmem>>, vector<8x128xf32>
    tpu.vector_store %arg8[%c40, %c0_52], %189 {strides = array<i32>} : memref<64x128xf32, #tpu.memory_space<vmem>>, vector<8x128xf32>,
    %191 = arith.truncf %186 : vector<8x64xf32> to vector<8x64xbf16>
    %cst_53 = arith.constant dense<0.000000e+00> : vector<8x256xf32>
    %192 = tpu.matmul %191, %6, %cst_53 {dimension_numbers = #tpu.dot_dimension_numbers<[1], [0], [0], [1], [0, 0, 1, 1], [], []>} : vector<8x64xbf16>, vector<64x256xbf16>, vector<8x256xf32> -> vector<8x256xf32>
    %193 = vector.extract_strided_slice %5 {offsets = [56, 0], sizes = [8, 256], strides = [1, 1]} : vector<64x256xf32> to vector<8x256xf32>
    %194 = arith.addf %193, %192 : vector<8x256xf32>
    %cst_54 = arith.constant 5.000000e-01 : f32
    %195 = vector.broadcast %cst_54 : f32 to vector<8x256xf32>
    %196 = arith.mulf %195, %194 : vector<8x256xf32>
    %197 = math.tanh %196 : vector<8x256xf32>
    %cst_55 = arith.constant 5.000000e-01 : f32
    %198 = vector.broadcast %cst_55 : f32 to vector<8x256xf32>
    %199 = arith.mulf %198, %197 : vector<8x256xf32>
    %cst_56 = arith.constant 5.000000e-01 : f32
    %200 = vector.broadcast %cst_56 : f32 to vector<8x256xf32>
    %201 = arith.addf %199, %200 : vector<8x256xf32>
    %202 = vector.extract_strided_slice %201 {offsets = [0, 0], sizes = [8, 64], strides = [1, 1]} : vector<8x256xf32> to vector<8x64xf32>
    %203 = vector.extract_strided_slice %201 {offsets = [0, 64], sizes = [8, 64], strides = [1, 1]} : vector<8x256xf32> to vector<8x64xf32>
    %204 = vector.extract_strided_slice %194 {offsets = [0, 128], sizes = [8, 64], strides = [1, 1]} : vector<8x256xf32> to vector<8x64xf32>
    %205 = math.tanh %204 : vector<8x64xf32>
    %206 = vector.extract_strided_slice %201 {offsets = [0, 192], sizes = [8, 64], strides = [1, 1]} : vector<8x256xf32> to vector<8x64xf32>
    %207 = arith.mulf %203, %184 : vector<8x64xf32>
    %208 = arith.mulf %202, %205 : vector<8x64xf32>
    %209 = arith.addf %207, %208 : vector<8x64xf32>
    %210 = math.tanh %209 : vector<8x64xf32>
    %211 = arith.mulf %206, %210 : vector<8x64xf32>
    %212 = vector.extract_strided_slice %211 {offsets = [0, 32], sizes = [8, 32], strides = [1, 1]} : vector<8x64xf32> to vector<8x32xf32>
    %cst_57 = arith.constant dense<0.000000e+00> : vector<8x128xf32>
    %213 = tpu.matmul %212, %7, %cst_57 {dimension_numbers = #tpu.dot_dimension_numbers<[1], [0], [0], [1], [0, 0, 1, 1], [], []>} : vector<8x32xf32>, vector<32x128xf32>, vector<8x128xf32> -> vector<8x128xf32>
    %214 = arith.addf %213, %10 : vector<8x128xf32>
    %c48 = arith.constant 48 : index
    %c0_58 = arith.constant 0 : index
    %215 = vector.load %arg8[%c48, %c0_58] : memref<64x128xf32, #tpu.memory_space<vmem>>, vector<8x128xf32>
    tpu.vector_store %arg8[%c48, %c0_58], %214 {strides = array<i32>} : memref<64x128xf32, #tpu.memory_space<vmem>>, vector<8x128xf32>,
    %216 = arith.truncf %211 : vector<8x64xf32> to vector<8x64xbf16>
    %cst_59 = arith.constant dense<0.000000e+00> : vector<8x256xf32>
    %217 = tpu.matmul %216, %6, %cst_59 {dimension_numbers = #tpu.dot_dimension_numbers<[1], [0], [0], [1], [0, 0, 1, 1], [], []>} : vector<8x64xbf16>, vector<64x256xbf16>, vector<8x256xf32> -> vector<8x256xf32>
    %c0_60 = arith.constant 0 : index
    %c0_61 = arith.constant 0 : index
    %218 = vector.load %arg2[%c0_60, %c0_61] : memref<1x256xf32, #tpu.memory_space<vmem>>, vector<1x256xf32>
    %219 = vector.broadcast %218 : vector<1x256xf32> to vector<8x256xf32>
    %220 = arith.addf %217, %219 : vector<8x256xf32>
    %221 = vector.extract_strided_slice %220 {offsets = [0, 32], sizes = [8, 32], strides = [1, 1]} : vector<8x256xf32> to vector<8x32xf32>
    %cst_62 = arith.constant 5.000000e-01 : f32
    %222 = vector.broadcast %cst_62 : f32 to vector<8x32xf32>
    %223 = arith.mulf %222, %221 : vector<8x32xf32>
    %224 = math.tanh %223 : vector<8x32xf32>
    %cst_63 = arith.constant 5.000000e-01 : f32
    %225 = vector.broadcast %cst_63 : f32 to vector<8x32xf32>
    %226 = arith.mulf %225, %224 : vector<8x32xf32>
    %cst_64 = arith.constant 5.000000e-01 : f32
    %227 = vector.broadcast %cst_64 : f32 to vector<8x32xf32>
    %228 = arith.addf %226, %227 : vector<8x32xf32>
    %229 = vector.extract_strided_slice %220 {offsets = [0, 96], sizes = [8, 32], strides = [1, 1]} : vector<8x256xf32> to vector<8x32xf32>
    %cst_65 = arith.constant 5.000000e-01 : f32
    %230 = vector.broadcast %cst_65 : f32 to vector<8x32xf32>
    %231 = arith.mulf %230, %229 : vector<8x32xf32>
    %232 = math.tanh %231 : vector<8x32xf32>
    %cst_66 = arith.constant 5.000000e-01 : f32
    %233 = vector.broadcast %cst_66 : f32 to vector<8x32xf32>
    %234 = arith.mulf %233, %232 : vector<8x32xf32>
    %cst_67 = arith.constant 5.000000e-01 : f32
    %235 = vector.broadcast %cst_67 : f32 to vector<8x32xf32>
    %236 = arith.addf %234, %235 : vector<8x32xf32>
    %237 = vector.extract_strided_slice %220 {offsets = [0, 160], sizes = [8, 32], strides = [1, 1]} : vector<8x256xf32> to vector<8x32xf32>
    %238 = math.tanh %237 : vector<8x32xf32>
    %239 = vector.extract_strided_slice %220 {offsets = [0, 224], sizes = [8, 32], strides = [1, 1]} : vector<8x256xf32> to vector<8x32xf32>
    %cst_68 = arith.constant 5.000000e-01 : f32
    %240 = vector.broadcast %cst_68 : f32 to vector<8x32xf32>
    %241 = arith.mulf %240, %239 : vector<8x32xf32>
    %242 = math.tanh %241 : vector<8x32xf32>
    %cst_69 = arith.constant 5.000000e-01 : f32
    %243 = vector.broadcast %cst_69 : f32 to vector<8x32xf32>
    %244 = arith.mulf %243, %242 : vector<8x32xf32>
    %cst_70 = arith.constant 5.000000e-01 : f32
    %245 = vector.broadcast %cst_70 : f32 to vector<8x32xf32>
    %246 = arith.addf %244, %245 : vector<8x32xf32>
    %247 = vector.extract_strided_slice %209 {offsets = [0, 32], sizes = [8, 32], strides = [1, 1]} : vector<8x64xf32> to vector<8x32xf32>
    %248 = arith.mulf %236, %247 : vector<8x32xf32>
    %249 = arith.mulf %228, %238 : vector<8x32xf32>
    %250 = arith.addf %248, %249 : vector<8x32xf32>
    %251 = math.tanh %250 : vector<8x32xf32>
    %252 = arith.mulf %246, %251 : vector<8x32xf32>
    %cst_71 = arith.constant dense<0.000000e+00> : vector<8x128xf32>
    %253 = tpu.matmul %252, %7, %cst_71 {dimension_numbers = #tpu.dot_dimension_numbers<[1], [0], [0], [1], [0, 0, 1, 1], [], []>} : vector<8x32xf32>, vector<32x128xf32>, vector<8x128xf32> -> vector<8x128xf32>
    %254 = arith.addf %253, %10 : vector<8x128xf32>
    %c56 = arith.constant 56 : index
    %c0_72 = arith.constant 0 : index
    %255 = vector.load %arg8[%c56, %c0_72] : memref<64x128xf32, #tpu.memory_space<vmem>>, vector<8x128xf32>
    tpu.vector_store %arg8[%c56, %c0_72], %254 {strides = array<i32>} : memref<64x128xf32, #tpu.memory_space<vmem>>, vector<8x128xf32>,
    %c0_73 = arith.constant 0 : index
    %c0_74 = arith.constant 0 : index
    %256 = vector.load %arg8[%c0_73, %c0_74] : memref<64x128xf32, #tpu.memory_space<vmem>>, vector<64x128xf32>
    %257 = tpu.iota {dimensions = array<i32: 0>} : vector<64x1xi32>
    %c8_i32 = arith.constant 8 : i32
    %c0_i32 = arith.constant 0 : i32
    %258 = arith.cmpi eq, %c8_i32, %c0_i32 : i32
    %c1_i32 = arith.constant 1 : i32
    %259 = arith.select %258, %c1_i32, %c8_i32 : i32
    %260 = vector.broadcast %259 : i32 to vector<64x1xi32>
    %261 = arith.remsi %257, %260 : vector<64x1xi32>
    %c0_i32_75 = arith.constant 0 : i32
    %262 = vector.broadcast %c0_i32_75 : i32 to vector<64x1xi32>
    %263 = arith.cmpi ne, %261, %262 : vector<64x1xi32>
    %c0_i32_76 = arith.constant 0 : i32
    %264 = vector.broadcast %c0_i32_76 : i32 to vector<64x1xi32>
    %265 = arith.cmpi slt, %261, %264 : vector<64x1xi32>
    %c0_i32_77 = arith.constant 0 : i32
    %266 = arith.cmpi slt, %259, %c0_i32_77 : i32
    %267 = vector.broadcast %266 : i1 to vector<64x1xi1>
    %268 = vector.broadcast %267 : vector<64x1xi1> to vector<64x1xi1>
    %269 = arith.xori %265, %268 : vector<64x1xi1>
    %270 = arith.andi %269, %263 : vector<64x1xi1>
    %271 = vector.broadcast %259 : i32 to vector<64x1xi32>
    %272 = arith.addi %261, %271 : vector<64x1xi32>
    %273 = arith.select %270, %272, %261 : vector<64x1xi1>, vector<64x1xi32>
    %c4_i32 = arith.constant 4 : i32
    %274 = vector.broadcast %c4_i32 : i32 to vector<64x1xi32>
    %275 = arith.cmpi slt, %273, %274 : vector<64x1xi32>
    %276 = arith.extui %275 : vector<64x1xi1> to vector<64x1xi32>
    %277 = arith.sitofp %276 : vector<64x1xi32> to vector<64x1xf32>
    %278 = vector.broadcast %277 : vector<64x1xf32> to vector<64x128xf32>
    %279 = arith.mulf %256, %278 : vector<64x128xf32>
    %cst_78 = arith.constant dense<0.000000e+00> : vector<128xf32>
    %280 = vector.multi_reduction <add>, %279, %cst_78 [0] : vector<64x128xf32> to vector<128xf32>
    %281 = vector.shape_cast %280 : vector<128xf32> to vector<1x128xf32>
    %cst_79 = arith.constant 3.200000e+01 : f32
    %282 = vector.broadcast %cst_79 : f32 to vector<1x128xf32>
    %283 = arith.divf %281, %282 : vector<1x128xf32>
    %284 = vector.broadcast %283 : vector<1x128xf32> to vector<64x128xf32>
    %285 = arith.subf %256, %284 : vector<64x128xf32>
    %286 = vector.broadcast %277 : vector<64x1xf32> to vector<64x128xf32>
    %287 = arith.mulf %285, %286 : vector<64x128xf32>
    %288 = arith.mulf %287, %287 : vector<64x128xf32>
    %cst_80 = arith.constant dense<0.000000e+00> : vector<128xf32>
    %289 = vector.multi_reduction <add>, %288, %cst_80 [0] : vector<64x128xf32> to vector<128xf32>
    %290 = vector.shape_cast %289 : vector<128xf32> to vector<1x128xf32>
    %cst_81 = arith.constant 3.200000e+01 : f32
    %291 = vector.broadcast %cst_81 : f32 to vector<1x128xf32>
    %292 = arith.divf %290, %291 : vector<1x128xf32>
    %293 = vector.broadcast %283 : vector<1x128xf32> to vector<64x128xf32>
    %294 = arith.subf %256, %293 : vector<64x128xf32>
    %cst_82 = arith.constant 9.99999974E-6 : f32
    %295 = vector.broadcast %cst_82 : f32 to vector<1x128xf32>
    %296 = arith.addf %292, %295 : vector<1x128xf32>
    %297 = math.rsqrt %296 : vector<1x128xf32>
    %298 = vector.broadcast %297 : vector<1x128xf32> to vector<64x128xf32>
    %299 = arith.mulf %294, %298 : vector<64x128xf32>
    %c0_83 = arith.constant 0 : index
    %c0_84 = arith.constant 0 : index
    %300 = vector.load %arg6[%c0_83, %c0_84] : memref<1x128xf32, #tpu.memory_space<vmem>>, vector<1x128xf32>
    %301 = vector.broadcast %300 : vector<1x128xf32> to vector<64x128xf32>
    %302 = arith.mulf %299, %301 : vector<64x128xf32>
    %c0_85 = arith.constant 0 : index
    %c0_86 = arith.constant 0 : index
    %303 = vector.load %arg7[%c0_85, %c0_86] : memref<1x128xf32, #tpu.memory_space<vmem>>, vector<1x128xf32>
    %304 = vector.broadcast %303 : vector<1x128xf32> to vector<64x128xf32>
    %305 = arith.addf %302, %304 : vector<64x128xf32>
    %cst_87 = arith.constant 0.000000e+00 : f32
    %306 = vector.broadcast %cst_87 : f32 to vector<64x128xf32>
    %307 = arith.maximumf %305, %306 : vector<64x128xf32>
    %c0_88 = arith.constant 0 : index
    %c0_89 = arith.constant 0 : index
    %308 = vector.load %arg8[%c0_88, %c0_89] : memref<64x128xf32, #tpu.memory_space<vmem>>, vector<64x128xf32>
    tpu.vector_store %arg8[%c0_88, %c0_89], %307 {strides = array<i32>} : memref<64x128xf32, #tpu.memory_space<vmem>>, vector<64x128xf32>,
    return
  }
}

</mosaic_0001>

<llo_original>
// kernel: lstm_model_forward.1
$region0: #{lstm_model_forward.1}
  #allocation0 [shape = 'u32[]', space=smem, size = 0x4, offset = 0x4, fixed_abs, tag = 'smem constant byte address 0x4 - core index']
  #allocation1 [shape = 'u32[144,128]{1,0:T(1,128)}', space=vmem, size = 0x12000, scoped, tag = 'internal scratch']
  %s0 = inlined_call_operand.vmem [shape: f32[64,16], index: 0, kind: input, shape index: {}]
  %s1 = inlined_call_operand.vmem [shape: f32[16,256], index: 1, kind: input, shape index: {}]
  %s2 = inlined_call_operand.vmem [shape: f32[1,256], index: 2, kind: input, shape index: {}]
  %s3 = inlined_call_operand.vmem [shape: bf16[64,256], index: 3, kind: input, shape index: {}]
  %s4 = inlined_call_operand.vmem [shape: f32[32,128], index: 4, kind: input, shape index: {}]
  %s5 = inlined_call_operand.vmem [shape: f32[1,128], index: 5, kind: input, shape index: {}]
  %s6 = inlined_call_operand.vmem [shape: f32[1,128], index: 6, kind: input, shape index: {}]
  %s7 = inlined_call_operand.vmem [shape: f32[1,128], index: 7, kind: input, shape index: {}]
  %s8 = inlined_call_operand.vmem [shape: f32[64,128], index: 8, kind: output, shape index: {}]
  %s9 = sld [smem:[#allocation0]]
  $region42: #{lstm_model_forward.1} parent=0
    _
  %s11 = ssub.s32 1, %s9
  %s12 = scalar_select 0, %s11, %s9
  // Predicated region
  $region2: #{lstm_model_forward.1} parent=0 // pred_check
    _
  $region3: #{lstm_model_forward.1} parent=0 // pred_check_branch
    %14 = sbr.rel (0) target = $region5
  $region4: #{lstm_model_forward.1} parent=0 // pred_region
    _
  $region5: #{lstm_model_forward.1} parent=0 // pred_fallthru
    _
  // Predicated region
  $region6: #{lstm_model_forward.1} parent=0 // pred_check
    _
  $region7: #{lstm_model_forward.1} parent=0 // pred_check_branch
    %16 = sbr.rel (0) target = $region9
  $region8: #{lstm_model_forward.1} parent=0 // pred_region
    _
  $region9: #{lstm_model_forward.1} parent=0 // pred_fallthru
    _
  // Predicated region
  $region10: #{lstm_model_forward.1} parent=0 // pred_check
    _
  $region11: #{lstm_model_forward.1} parent=0 // pred_check_branch
    %18 = sbr.rel (0) target = $region13
  $region12: #{lstm_model_forward.1} parent=0 // pred_region
    _
  $region13: #{lstm_model_forward.1} parent=0 // pred_fallthru
    _
  // Predicated region
  $region14: #{lstm_model_forward.1} parent=0 // pred_check
    _
  $region15: #{lstm_model_forward.1} parent=0 // pred_check_branch
    %20 = sbr.rel (0) target = $region17
  $region16: #{lstm_model_forward.1} parent=0 // pred_region
    _
  $region17: #{lstm_model_forward.1} parent=0 // pred_fallthru
    _
  // Predicated region
  $region18: #{lstm_model_forward.1} parent=0 // pred_check
    _
  $region19: #{lstm_model_forward.1} parent=0 // pred_check_branch
    %22 = sbr.rel (0) target = $region21
  $region20: #{lstm_model_forward.1} parent=0 // pred_region
    _
  $region21: #{lstm_model_forward.1} parent=0 // pred_fallthru
    _
  // Predicated region
  $region22: #{lstm_model_forward.1} parent=0 // pred_check
    _
  $region23: #{lstm_model_forward.1} parent=0 // pred_check_branch
    %24 = sbr.rel (0) target = $region25
  $region24: #{lstm_model_forward.1} parent=0 // pred_region
    _
  $region25: #{lstm_model_forward.1} parent=0 // pred_fallthru
    _
  // Predicated region
  $region26: #{lstm_model_forward.1} parent=0 // pred_check
    _
  $region27: #{lstm_model_forward.1} parent=0 // pred_check_branch
    %26 = sbr.rel (0) target = $region29
  $region28: #{lstm_model_forward.1} parent=0 // pred_region
    _
  $region29: #{lstm_model_forward.1} parent=0 // pred_fallthru
    _
  // Predicated region
  $region30: #{lstm_model_forward.1} parent=0 // pred_check
    _
  $region31: #{lstm_model_forward.1} parent=0 // pred_check_branch
    %28 = sbr.rel (0) target = $region33
  $region32: #{lstm_model_forward.1} parent=0 // pred_region
    _
  $region33: #{lstm_model_forward.1} parent=0 // pred_fallthru
    _
  %v30 = vld [vmem:[%s0] sm:$0xff]
  %v31 = vld [vmem:[%s0 + $0x8] sm:$0xff]
  %v32 = vld [vmem:[%s0 + $0x10] sm:$0xff]
  %v33 = vld [vmem:[%s0 + $0x18] sm:$0xff]
  %v34 = vld [vmem:[%s0 + $0x20] sm:$0xff]
  %v35 = vld [vmem:[%s0 + $0x28] sm:$0xff]
  %v36 = vld [vmem:[%s0 + $0x30] sm:$0xff]
  %v37 = vld [vmem:[%s0 + $0x38] sm:$0xff]
  %v38 = vld [vmem:[%s1] sm:$0xff]
  %v39 = vld [vmem:[%s1 + $0x8] sm:$0xff]
  %v40 = vld [vmem:[%s1 + $0x10] sm:$0xff]
  %v41 = vld [vmem:[%s1 + $0x18] sm:$0xff]
  %v42 = vld [vmem:[%s2] sm:$0x3]
  %v44 = vlaneseq
  %v45 = vshrl.u32 %v44, 7
  %v46 = vsub.s32 0, %v45
  %v47 = vrot.slane %v42, %v46
  %v48 = vlaneseq
  %v49 = vshrl.u32 %v48, 7
  %v50 = vsub.s32 1, %v49
  %v51 = vrot.slane %v42, %v50
  %vm54 = vcmask 130048
  %v56 = vsel %vm54, %v30, 0
  %v59 = vsel %vm54, %v31, 0
  %v62 = vsel %vm54, %v32, 0
  %v65 = vsel %vm54, %v33, 0
  %v68 = vsel %vm54, %v34, 0
  %v71 = vsel %vm54, %v35, 0
  %v74 = vsel %vm54, %v36, 0
  %v77 = vsel %vm54, %v37, 0
  %79 = vmatprep.subr.mxu0 %v39
  %80 = vmatpush1.msra.mxu0 %v38
  %81 = vmatprep.subr.mxu0 %v41
  %82 = vmatpush1.msra.mxu0 %v40
  %83 = vmatprep.subr.mxu0 0.0
  %84 = vmatpush1.msra.mxu0 0.0
  %85 = vmatprep.subr.mxu0 0.0
  %86 = vmatpush1.msra.mxu0 0.0
  %87 = vmatprep.subr.mxu0 0.0
  %88 = vmatpush1.msra.mxu0 0.0
  %89 = vmatprep.subr.mxu0 0.0
  %90 = vmatpush1.msra.mxu0 0.0
  %91 = vmatprep.subr.mxu0 0.0
  %92 = vmatpush1.msra.mxu0 0.0
  %93 = vmatprep.subr.mxu0 0.0
  %94 = vmatpush1.msra.mxu0 0.0
  %95 = vmatprep.subr.mxu0 0.0
  %96 = vmatpush1.msra.mxu0 0.0
  %97 = vmatprep.subr.mxu0 0.0
  %98 = vmatpush1.msra.mxu0 0.0
  %99 = vmatprep.subr.mxu0 0.0
  %100 = vmatpush1.msra.mxu0 0.0
  %101 = vmatprep.subr.mxu0 0.0
  %102 = vmatpush1.msra.mxu0 0.0
  %103 = vmatprep.subr.mxu0 0.0
  %104 = vmatpush1.msra.mxu0 0.0
  %105 = vmatprep.subr.mxu0 0.0
  %106 = vmatpush1.msra.mxu0 0.0
  %107 = vmatprep.subr.mxu0 0.0
  %108 = vmatpush1.msra.mxu0 0.0
  %109 = vmatprep.subr.mxu0 0.0
  %110 = vmatpush1.msra.mxu0 0.0
  %111 = vmatprep.subr.mxu0 0.0
  %112 = vmatpush1.msra.mxu0 0.0
  %113 = vmatprep.subr.mxu0 0.0
  %114 = vmatpush1.msra.mxu0 0.0
  %115 = vmatprep.subr.mxu0 0.0
  %116 = vmatpush1.msra.mxu0 0.0
  %117 = vmatprep.subr.mxu0 0.0
  %118 = vmatpush1.msra.mxu0 0.0
  %119 = vmatprep.subr.mxu0 0.0
  %120 = vmatpush1.msra.mxu0 0.0
  %121 = vmatprep.subr.mxu0 0.0
  %122 = vmatpush1.msra.mxu0 0.0
  %123 = vmatprep.subr.mxu0 0.0
  %124 = vmatpush1.msra.mxu0 0.0
  %125 = vmatprep.subr.mxu0 0.0
  %126 = vmatpush1.msra.mxu0 0.0
  %127 = vmatprep.subr.mxu0 0.0
  %128 = vmatpush1.msra.mxu0 0.0
  %129 = vmatprep.subr.mxu0 0.0
  %130 = vmatpush1.msra.mxu0 0.0
  %131 = vmatprep.subr.mxu0 0.0
  %132 = vmatpush1.msra.mxu0 0.0
  %133 = vmatprep.subr.mxu0 0.0
  %134 = vmatpush1.msra.mxu0 0.0
  %135 = vmatprep.subr.mxu0 0.0
  %136 = vmatpush1.msra.mxu0 0.0
  %137 = vmatprep.subr.mxu0 0.0
  %138 = vmatpush1.msra.mxu0 0.0
  %139 = vmatprep.subr.mxu0 0.0
  %140 = vmatpush1.msra.mxu0 0.0
  %141 = vmatprep.subr.mxu0 0.0
  %142 = vmatpush1.msra.mxu0 0.0
  %143 = vmatprep.mubr.f32.mxu0 0.0
  %144 = vmatmul.mubr.f32.gmra.mrb[0].mxu0 %v56
  %v145 = vpop.f32.mrb[0].mxu0
  %v146 = vadd.f32 %v47, %v145
  %v147 = vpop.f32.mrb[0].mxu0
  %v148 = vadd.f32 %v51, %v147
  %149 = vmatprep.mubr.f32.mxu0 0.0
  %150 = vmatmul.mubr.f32.gmra.mrb[0].mxu0 %v59
  %v151 = vpop.f32.mrb[0].mxu0
  %v152 = vadd.f32 %v47, %v151
  %v153 = vpop.f32.mrb[0].mxu0
  %v154 = vadd.f32 %v51, %v153
  %155 = vmatprep.mubr.f32.mxu0 0.0
  %156 = vmatmul.mubr.f32.gmra.mrb[0].mxu0 %v62
  %v157 = vpop.f32.mrb[0].mxu0
  %v158 = vadd.f32 %v47, %v157
  %v159 = vpop.f32.mrb[0].mxu0
  %v160 = vadd.f32 %v51, %v159
  %161 = vmatprep.mubr.f32.mxu0 0.0
  %162 = vmatmul.mubr.f32.gmra.mrb[0].mxu0 %v65
  %v163 = vpop.f32.mrb[0].mxu0
  %v164 = vadd.f32 %v47, %v163
  %v165 = vpop.f32.mrb[0].mxu0
  %v166 = vadd.f32 %v51, %v165
  %167 = vmatprep.mubr.f32.mxu0 0.0
  %168 = vmatmul.mubr.f32.gmra.mrb[0].mxu0 %v68
  %v169 = vpop.f32.mrb[0].mxu0
  %v170 = vadd.f32 %v47, %v169
  %v171 = vpop.f32.mrb[0].mxu0
  %v172 = vadd.f32 %v51, %v171
  %173 = vmatprep.mubr.f32.mxu0 0.0
  %174 = vmatmul.mubr.f32.gmra.mrb[0].mxu0 %v71
  %v175 = vpop.f32.mrb[0].mxu0
  %v176 = vadd.f32 %v47, %v175
  %v177 = vpop.f32.mrb[0].mxu0
  %v178 = vadd.f32 %v51, %v177
  %179 = vmatprep.mubr.f32.mxu0 0.0
  %180 = vmatmul.mubr.f32.gmra.mrb[0].mxu0 %v74
  %v181 = vpop.f32.mrb[0].mxu0
  %v182 = vadd.f32 %v47, %v181
  %v183 = vpop.f32.mrb[0].mxu0
  %v184 = vadd.f32 %v51, %v183
  %185 = vmatprep.mubr.f32.mxu0 0.0
  %186 = vmatmul.mubr.f32.gmra.mrb[0].mxu0 %v77
  %v187 = vpop.f32.mrb[0].mxu0
  %v188 = vadd.f32 %v47, %v187
  %v189 = vpop.f32.mrb[0].mxu0
  %v190 = vadd.f32 %v51, %v189
  %191 = vdwg.mxu0
  %v192 = vld [vmem:[%s3] sm:$0xff]
  %v193 = vld [vmem:[%s3 + $0x8] sm:$0xff]
  %v194 = vld [vmem:[%s3 + $0x10] sm:$0xff]
  %v195 = vld [vmem:[%s3 + $0x18] sm:$0xff]
  %v196 = vld [vmem:[%s3 + $0x20] sm:$0xff]
  %v197 = vld [vmem:[%s3 + $0x28] sm:$0xff]
  %v198 = vld [vmem:[%s3 + $0x30] sm:$0xff]
  %v199 = vld [vmem:[%s3 + $0x38] sm:$0xff]
  %v200 = vld [vmem:[%s4] sm:$0xff]
  %v201 = vld [vmem:[%s4 + $0x8] sm:$0xff]
  %v202 = vld [vmem:[%s4 + $0x10] sm:$0xff]
  %v203 = vld [vmem:[%s4 + $0x18] sm:$0xff]
  %v204 = vld [vmem:[%s5] sm:$0x1]
  %v206 = vlaneseq
  %v207 = vshrl.u32 %v206, 7
  %v208 = vsub.s32 0, %v207
  %v209 = vrot.slane %v204, %v208
  %v211 = vlaneseq
  %v212 = vand.u32 %v211, 127
  %vm213 = vcmp.lt.s32.totalorder %v212, 32
  %v214 = vsel %vm213, 1, 0
  %v215 = vcvt.s32.f32 %v214
  %v216 = vadd.f32 %v146, 0.0
  %v217 = vadd.f32 %v148, 0.0
  %v218 = vmul.f32 %v216, 0.5
  %v219 = vmul.f32 %v217, 0.5
  %v220 = vtanh.pop %v218
  %v221 = vtanh.pop %v219
  %v222 = vmul.f32 %v220, 0.5
  %v223 = vmul.f32 %v221, 0.5
  %v224 = vadd.f32 %v222, 0.5
  %v225 = vadd.f32 %v223, 0.5
  %v226 = vtanh.pop %v217
  %v227 = vmul.f32 %v224, 0.0
  %v228 = vmul.f32 %v224, %v226
  %230 = vrot.lane.b32.xlu0 %v228, 64
  %v231 = vpop.permute.xlu0 %230
  %v233 = vadd.f32 %v227, %v231
  %v234 = vtanh.pop %v233
  %v235 = vmul.f32 %v225, %v234
  %237 = vrot.lane.b32.xlu0 %v215, 64
  %v238 = vpop.permute.xlu0 %237
  %v240 = vmul.f32 %v235, %v238
  %v241 = vmul.f32 %v233, %v238
  %v242 = vpack.c.bf16 %v240, %v240
  %244 = vrot.lane.b32.xlu0 %v242, 64
  %v245 = vpop.permute.xlu0 %244
  %v254 = vunpack.c.l.b16 %v192
  %v255 = vunpack.c.h.b16 %v192
  %v256 = vunpack.c.l.b16 %v193
  %v257 = vunpack.c.h.b16 %v193
  %v258 = vunpack.c.l.b16 %v194
  %v259 = vunpack.c.h.b16 %v194
  %v260 = vunpack.c.l.b16 %v195
  %v261 = vunpack.c.h.b16 %v195
  %v262 = vunpack.c.l.b16 %v196
  %v263 = vunpack.c.h.b16 %v196
  %v264 = vunpack.c.l.b16 %v197
  %v265 = vunpack.c.h.b16 %v197
  %v266 = vunpack.c.l.b16 %v198
  %v267 = vunpack.c.h.b16 %v198
  %v268 = vunpack.c.l.b16 %v199
  %v269 = vunpack.c.h.b16 %v199
  %v270 = vpack.c.b16 %v256, %v254
  %v271 = vpack.c.b16 %v257, %v255
  %v272 = vpack.c.b16 %v260, %v258
  %v273 = vpack.c.b16 %v261, %v259
  %v274 = vpack.c.b16 %v264, %v262
  %v275 = vpack.c.b16 %v265, %v263
  %v276 = vpack.c.b16 %v268, %v266
  %v277 = vpack.c.b16 %v269, %v267
  %vm286 = vcmask 523264
  %v288 = vsel %vm286, %v245, 0
  %290 = vmatprep.subr.bf16.mxu0 %v271
  %291 = vmatpush1.bf16.msra.mxu0 %v270
  %292 = vmatprep.subr.bf16.mxu0 %v273
  %293 = vmatpush1.bf16.msra.mxu0 %v272
  %294 = vmatprep.subr.bf16.mxu0 %v275
  %295 = vmatpush1.bf16.msra.mxu0 %v274
  %296 = vmatprep.subr.bf16.mxu0 %v277
  %297 = vmatpush1.bf16.msra.mxu0 %v276
  %298 = vmatprep.subr.bf16.mxu0 0
  %299 = vmatpush1.bf16.msra.mxu0 0
  %300 = vmatprep.subr.bf16.mxu0 0
  %301 = vmatpush1.bf16.msra.mxu0 0
  %302 = vmatprep.subr.bf16.mxu0 0
  %303 = vmatpush1.bf16.msra.mxu0 0
  %304 = vmatprep.subr.bf16.mxu0 0
  %305 = vmatpush1.bf16.msra.mxu0 0
  %306 = vmatprep.subr.bf16.mxu0 0
  %307 = vmatpush1.bf16.msra.mxu0 0
  %308 = vmatprep.subr.bf16.mxu0 0
  %309 = vmatpush1.bf16.msra.mxu0 0
  %310 = vmatprep.subr.bf16.mxu0 0
  %311 = vmatpush1.bf16.msra.mxu0 0
  %312 = vmatprep.subr.bf16.mxu0 0
  %313 = vmatpush1.bf16.msra.mxu0 0
  %314 = vmatprep.subr.bf16.mxu0 0
  %315 = vmatpush1.bf16.msra.mxu0 0
  %316 = vmatprep.subr.bf16.mxu0 0
  %317 = vmatpush1.bf16.msra.mxu0 0
  %318 = vmatprep.subr.bf16.mxu0 0
  %319 = vmatpush1.bf16.msra.mxu0 0
  %320 = vmatprep.subr.bf16.mxu0 0
  %321 = vmatpush1.bf16.msra.mxu0 0
  %322 = vmatprep.mubr.bf16.mxu0 0
  %323 = vmatmul.mubr.bf16.gmra.mrb[0].mxu0 %v288
  %v324 = vpop.f32.mrb[0].mxu0
  %v325 = vadd.f32 0.0, %v324
  %v326 = vpop.f32.mrb[0].mxu0
  %v327 = vadd.f32 0.0, %v326
  %v328 = vpop.f32.mrb[0].mxu0
  %v329 = vpop.f32.mrb[0].mxu0
  %330 = vdwg.mxu0
  %v331 = vadd.f32 %v152, %v325
  %v332 = vadd.f32 %v154, %v327
  %v333 = vmul.f32 %v331, 0.5
  %v334 = vmul.f32 %v332, 0.5
  %v335 = vtanh.pop %v333
  %v336 = vtanh.pop %v334
  %v337 = vmul.f32 %v335, 0.5
  %v338 = vmul.f32 %v336, 0.5
  %v339 = vadd.f32 %v337, 0.5
  %v340 = vadd.f32 %v338, 0.5
  %v341 = vtanh.pop %v332
  %v342 = vmul.f32 %v339, %v241
  %v343 = vmul.f32 %v339, %v341
  %345 = vrot.lane.b32.xlu0 %v343, 64
  %v346 = vpop.permute.xlu0 %345
  %v348 = vadd.f32 %v342, %v346
  %v349 = vtanh.pop %v348
  %v350 = vmul.f32 %v340, %v349
  %352 = vrot.lane.b32.xlu0 %v350, 32
  %v353 = vpop.permute.xlu0 %352
  %vm354 = vcmask 261120
  %v355 = vsel %vm354, %v353, 0
  %357 = vmatprep.subr.mxu0 0.0
  %358 = vmatpush1.msra.mxu0 %v200
  %359 = vmatprep.subr.mxu0 0.0
  %360 = vmatpush1.msra.mxu0 %v201
  %361 = vmatprep.subr.mxu0 0.0
  %362 = vmatpush1.msra.mxu0 %v202
  %363 = vmatprep.subr.mxu0 0.0
  %364 = vmatpush1.msra.mxu0 %v203
  %365 = vmatprep.subr.mxu0 0.0
  %366 = vmatpush1.msra.mxu0 0.0
  %367 = vmatprep.subr.mxu0 0.0
  %368 = vmatpush1.msra.mxu0 0.0
  %369 = vmatprep.subr.mxu0 0.0
  %370 = vmatpush1.msra.mxu0 0.0
  %371 = vmatprep.subr.mxu0 0.0
  %372 = vmatpush1.msra.mxu0 0.0
  %373 = vmatprep.subr.mxu0 0.0
  %374 = vmatpush1.msra.mxu0 0.0
  %375 = vmatprep.subr.mxu0 0.0
  %376 = vmatpush1.msra.mxu0 0.0
  %377 = vmatprep.subr.mxu0 0.0
  %378 = vmatpush1.msra.mxu0 0.0
  %379 = vmatprep.subr.mxu0 0.0
  %380 = vmatpush1.msra.mxu0 0.0
  %381 = vmatprep.subr.mxu0 0.0
  %382 = vmatpush1.msra.mxu0 0.0
  %383 = vmatprep.subr.mxu0 0.0
  %384 = vmatpush1.msra.mxu0 0.0
  %385 = vmatprep.subr.mxu0 0.0
  %386 = vmatpush1.msra.mxu0 0.0
  %387 = vmatprep.subr.mxu0 0.0
  %388 = vmatpush1.msra.mxu0 0.0
  %389 = vmatprep.subr.mxu0 0.0
  %390 = vmatpush1.msra.mxu0 0.0
  %391 = vmatprep.subr.mxu0 0.0
  %392 = vmatpush1.msra.mxu0 0.0
  %393 = vmatprep.subr.mxu0 0.0
  %394 = vmatpush1.msra.mxu0 0.0
  %395 = vmatprep.subr.mxu0 0.0
  %396 = vmatpush1.msra.mxu0 0.0
  %397 = vmatprep.subr.mxu0 0.0
  %398 = vmatpush1.msra.mxu0 0.0
  %399 = vmatprep.subr.mxu0 0.0
  %400 = vmatpush1.msra.mxu0 0.0
  %401 = vmatprep.subr.mxu0 0.0
  %402 = vmatpush1.msra.mxu0 0.0
  %403 = vmatprep.subr.mxu0 0.0
  %404 = vmatpush1.msra.mxu0 0.0
  %405 = vmatprep.subr.mxu0 0.0
  %406 = vmatpush1.msra.mxu0 0.0
  %407 = vmatprep.subr.mxu0 0.0
  %408 = vmatpush1.msra.mxu0 0.0
  %409 = vmatprep.subr.mxu0 0.0
  %410 = vmatpush1.msra.mxu0 0.0
  %411 = vmatprep.subr.mxu0 0.0
  %412 = vmatpush1.msra.mxu0 0.0
  %413 = vmatprep.subr.mxu0 0.0
  %414 = vmatpush1.msra.mxu0 0.0
  %415 = vmatprep.subr.mxu0 0.0
  %416 = vmatpush1.msra.mxu0 0.0
  %417 = vmatprep.subr.mxu0 0.0
  %418 = vmatpush1.msra.mxu0 0.0
  %419 = vmatprep.subr.mxu0 0.0
  %420 = vmatpush1.msra.mxu0 0.0
  %421 = vmatprep.mubr.f32.mxu0 0.0
  %422 = vmatmul.mubr.f32.gmra.mrb[0].mxu0 %v355
  %v423 = vpop.f32.mrb[0].mxu0
  %v424 = vadd.f32 %v209, %v423
  %v425 = vpop.f32.mrb[0].mxu0
  %426 = vdwg.mxu0
  %427 = vst [vmem:[%s8] sm:$0xff] %v424
  %v428 = vpack.c.bf16 %v350, %v350
  %430 = vrot.lane.b32.xlu0 %v428, 64
  %v431 = vpop.permute.xlu0 %430
  %v433 = vsel %vm286, %v431, 0
  %435 = vmatprep.subr.bf16.mxu0 %v271
  %436 = vmatpush1.bf16.msra.mxu0 %v270
  %437 = vmatprep.subr.bf16.mxu0 %v273
  %438 = vmatpush1.bf16.msra.mxu0 %v272
  %439 = vmatprep.subr.bf16.mxu0 %v275
  %440 = vmatpush1.bf16.msra.mxu0 %v274
  %441 = vmatprep.subr.bf16.mxu0 %v277
  %442 = vmatpush1.bf16.msra.mxu0 %v276
  %443 = vmatprep.subr.bf16.mxu0 0
  %444 = vmatpush1.bf16.msra.mxu0 0
  %445 = vmatprep.subr.bf16.mxu0 0
  %446 = vmatpush1.bf16.msra.mxu0 0
  %447 = vmatprep.subr.bf16.mxu0 0
  %448 = vmatpush1.bf16.msra.mxu0 0
  %449 = vmatprep.subr.bf16.mxu0 0
  %450 = vmatpush1.bf16.msra.mxu0 0
  %451 = vmatprep.subr.bf16.mxu0 0
  %452 = vmatpush1.bf16.msra.mxu0 0
  %453 = vmatprep.subr.bf16.mxu0 0
  %454 = vmatpush1.bf16.msra.mxu0 0
  %455 = vmatprep.subr.bf16.mxu0 0
  %456 = vmatpush1.bf16.msra.mxu0 0
  %457 = vmatprep.subr.bf16.mxu0 0
  %458 = vmatpush1.bf16.msra.mxu0 0
  %459 = vmatprep.subr.bf16.mxu0 0
  %460 = vmatpush1.bf16.msra.mxu0 0
  %461 = vmatprep.subr.bf16.mxu0 0
  %462 = vmatpush1.bf16.msra.mxu0 0
  %463 = vmatprep.subr.bf16.mxu0 0
  %464 = vmatpush1.bf16.msra.mxu0 0
  %465 = vmatprep.subr.bf16.mxu0 0
  %466 = vmatpush1.bf16.msra.mxu0 0
  %467 = vmatprep.mubr.bf16.mxu0 0
  %468 = vmatmul.mubr.bf16.gmra.mrb[0].mxu0 %v433
  %v469 = vpop.f32.mrb[0].mxu0
  %v470 = vadd.f32 0.0, %v469
  %v471 = vpop.f32.mrb[0].mxu0
  %v472 = vadd.f32 0.0, %v471
  %v473 = vpop.f32.mrb[0].mxu0
  %v474 = vpop.f32.mrb[0].mxu0
  %475 = vdwg.mxu0
  %v476 = vadd.f32 %v158, %v470
  %v477 = vadd.f32 %v160, %v472
  %v478 = vmul.f32 %v476, 0.5
  %v479 = vmul.f32 %v477, 0.5
  %v480 = vtanh.pop %v478
  %v481 = vtanh.pop %v479
  %v482 = vmul.f32 %v480, 0.5
  %v483 = vmul.f32 %v481, 0.5
  %v484 = vadd.f32 %v482, 0.5
  %v485 = vadd.f32 %v483, 0.5
  %v486 = vtanh.pop %v477
  %v487 = vmul.f32 %v484, %v348
  %v488 = vmul.f32 %v484, %v486
  %490 = vrot.lane.b32.xlu0 %v488, 64
  %v491 = vpop.permute.xlu0 %490
  %v493 = vadd.f32 %v487, %v491
  %v494 = vtanh.pop %v493
  %v495 = vmul.f32 %v485, %v494
  %497 = vrot.lane.b32.xlu0 %v495, 32
  %v498 = vpop.permute.xlu0 %497
  %v499 = vsel %vm354, %v498, 0
  %501 = vmatprep.subr.mxu0 0.0
  %502 = vmatpush1.msra.mxu0 %v200
  %503 = vmatprep.subr.mxu0 0.0
  %504 = vmatpush1.msra.mxu0 %v201
  %505 = vmatprep.subr.mxu0 0.0
  %506 = vmatpush1.msra.mxu0 %v202
  %507 = vmatprep.subr.mxu0 0.0
  %508 = vmatpush1.msra.mxu0 %v203
  %509 = vmatprep.subr.mxu0 0.0
  %510 = vmatpush1.msra.mxu0 0.0
  %511 = vmatprep.subr.mxu0 0.0
  %512 = vmatpush1.msra.mxu0 0.0
  %513 = vmatprep.subr.mxu0 0.0
  %514 = vmatpush1.msra.mxu0 0.0
  %515 = vmatprep.subr.mxu0 0.0
  %516 = vmatpush1.msra.mxu0 0.0
  %517 = vmatprep.subr.mxu0 0.0
  %518 = vmatpush1.msra.mxu0 0.0
  %519 = vmatprep.subr.mxu0 0.0
  %520 = vmatpush1.msra.mxu0 0.0
  %521 = vmatprep.subr.mxu0 0.0
  %522 = vmatpush1.msra.mxu0 0.0
  %523 = vmatprep.subr.mxu0 0.0
  %524 = vmatpush1.msra.mxu0 0.0
  %525 = vmatprep.subr.mxu0 0.0
  %526 = vmatpush1.msra.mxu0 0.0
  %527 = vmatprep.subr.mxu0 0.0
  %528 = vmatpush1.msra.mxu0 0.0
  %529 = vmatprep.subr.mxu0 0.0
  %530 = vmatpush1.msra.mxu0 0.0
  %531 = vmatprep.subr.mxu0 0.0
  %532 = vmatpush1.msra.mxu0 0.0
  %533 = vmatprep.subr.mxu0 0.0
  %534 = vmatpush1.msra.mxu0 0.0
  %535 = vmatprep.subr.mxu0 0.0
  %536 = vmatpush1.msra.mxu0 0.0
  %537 = vmatprep.subr.mxu0 0.0
  %538 = vmatpush1.msra.mxu0 0.0
  %539 = vmatprep.subr.mxu0 0.0
  %540 = vmatpush1.msra.mxu0 0.0
  %541 = vmatprep.subr.mxu0 0.0
  %542 = vmatpush1.msra.mxu0 0.0
  %543 = vmatprep.subr.mxu0 0.0
  %544 = vmatpush1.msra.mxu0 0.0
  %545 = vmatprep.subr.mxu0 0.0
  %546 = vmatpush1.msra.mxu0 0.0
  %547 = vmatprep.subr.mxu0 0.0
  %548 = vmatpush1.msra.mxu0 0.0
  %549 = vmatprep.subr.mxu0 0.0
  %550 = vmatpush1.msra.mxu0 0.0
  %551 = vmatprep.subr.mxu0 0.0
  %552 = vmatpush1.msra.mxu0 0.0
  %553 = vmatprep.subr.mxu0 0.0
  %554 = vmatpush1.msra.mxu0 0.0
  %555 = vmatprep.subr.mxu0 0.0
  %556 = vmatpush1.msra.mxu0 0.0
  %557 = vmatprep.subr.mxu0 0.0
  %558 = vmatpush1.msra.mxu0 0.0
  %559 = vmatprep.subr.mxu0 0.0
  %560 = vmatpush1.msra.mxu0 0.0
  %561 = vmatprep.subr.mxu0 0.0
  %562 = vmatpush1.msra.mxu0 0.0
  %563 = vmatprep.subr.mxu0 0.0
  %564 = vmatpush1.msra.mxu0 0.0
  %565 = vmatprep.mubr.f32.mxu0 0.0
  %566 = vmatmul.mubr.f32.gmra.mrb[0].mxu0 %v499
  %v567 = vpop.f32.mrb[0].mxu0
  %v568 = vadd.f32 %v209, %v567
  %v569 = vpop.f32.mrb[0].mxu0
  %570 = vdwg.mxu0
  %571 = vst [vmem:[%s8 + $0x8] sm:$0xff] %v568
  %v572 = vpack.c.bf16 %v495, %v495
  %574 = vrot.lane.b32.xlu0 %v572, 64
  %v575 = vpop.permute.xlu0 %574
  %v577 = vsel %vm286, %v575, 0
  %579 = vmatprep.subr.bf16.mxu0 %v271
  %580 = vmatpush1.bf16.msra.mxu0 %v270
  %581 = vmatprep.subr.bf16.mxu0 %v273
  %582 = vmatpush1.bf16.msra.mxu0 %v272
  %583 = vmatprep.subr.bf16.mxu0 %v275
  %584 = vmatpush1.bf16.msra.mxu0 %v274
  %585 = vmatprep.subr.bf16.mxu0 %v277
  %586 = vmatpush1.bf16.msra.mxu0 %v276
  %587 = vmatprep.subr.bf16.mxu0 0
  %588 = vmatpush1.bf16.msra.mxu0 0
  %589 = vmatprep.subr.bf16.mxu0 0
  %590 = vmatpush1.bf16.msra.mxu0 0
  %591 = vmatprep.subr.bf16.mxu0 0
  %592 = vmatpush1.bf16.msra.mxu0 0
  %593 = vmatprep.subr.bf16.mxu0 0
  %594 = vmatpush1.bf16.msra.mxu0 0
  %595 = vmatprep.subr.bf16.mxu0 0
  %596 = vmatpush1.bf16.msra.mxu0 0
  %597 = vmatprep.subr.bf16.mxu0 0
  %598 = vmatpush1.bf16.msra.mxu0 0
  %599 = vmatprep.subr.bf16.mxu0 0
  %600 = vmatpush1.bf16.msra.mxu0 0
  %601 = vmatprep.subr.bf16.mxu0 0
  %602 = vmatpush1.bf16.msra.mxu0 0
  %603 = vmatprep.subr.bf16.mxu0 0
  %604 = vmatpush1.bf16.msra.mxu0 0
  %605 = vmatprep.subr.bf16.mxu0 0
  %606 = vmatpush1.bf16.msra.mxu0 0
  %607 = vmatprep.subr.bf16.mxu0 0
  %608 = vmatpush1.bf16.msra.mxu0 0
  %609 = vmatprep.subr.bf16.mxu0 0
  %610 = vmatpush1.bf16.msra.mxu0 0
  %611 = vmatprep.mubr.bf16.mxu0 0
  %612 = vmatmul.mubr.bf16.gmra.mrb[0].mxu0 %v577
  %v613 = vpop.f32.mrb[0].mxu0
  %v614 = vadd.f32 0.0, %v613
  %v615 = vpop.f32.mrb[0].mxu0
  %v616 = vadd.f32 0.0, %v615
  %v617 = vpop.f32.mrb[0].mxu0
  %v618 = vpop.f32.mrb[0].mxu0
  %619 = vdwg.mxu0
  %v620 = vadd.f32 %v164, %v614
  %v621 = vadd.f32 %v166, %v616
  %v622 = vmul.f32 %v620, 0.5
  %v623 = vmul.f32 %v621, 0.5
  %v624 = vtanh.pop %v622
  %v625 = vtanh.pop %v623
  %v626 = vmul.f32 %v624, 0.5
  %v627 = vmul.f32 %v625, 0.5
  %v628 = vadd.f32 %v626, 0.5
  %v629 = vadd.f32 %v627, 0.5
  %v630 = vtanh.pop %v621
  %v631 = vmul.f32 %v628, %v493
  %v632 = vmul.f32 %v628, %v630
  %634 = vrot.lane.b32.xlu0 %v632, 64
  %v635 = vpop.permute.xlu0 %634
  %v637 = vadd.f32 %v631, %v635
  %v638 = vtanh.pop %v637
  %v639 = vmul.f32 %v629, %v638
  %641 = vrot.lane.b32.xlu0 %v639, 32
  %v642 = vpop.permute.xlu0 %641
  %v643 = vsel %vm354, %v642, 0
  %645 = vmatprep.subr.mxu0 0.0
  %646 = vmatpush1.msra.mxu0 %v200
  %647 = vmatprep.subr.mxu0 0.0
  %648 = vmatpush1.msra.mxu0 %v201
  %649 = vmatprep.subr.mxu0 0.0
  %650 = vmatpush1.msra.mxu0 %v202
  %651 = vmatprep.subr.mxu0 0.0
  %652 = vmatpush1.msra.mxu0 %v203
  %653 = vmatprep.subr.mxu0 0.0
  %654 = vmatpush1.msra.mxu0 0.0
  %655 = vmatprep.subr.mxu0 0.0
  %656 = vmatpush1.msra.mxu0 0.0
  %657 = vmatprep.subr.mxu0 0.0
  %658 = vmatpush1.msra.mxu0 0.0
  %659 = vmatprep.subr.mxu0 0.0
  %660 = vmatpush1.msra.mxu0 0.0
  %661 = vmatprep.subr.mxu0 0.0
  %662 = vmatpush1.msra.mxu0 0.0
  %663 = vmatprep.subr.mxu0 0.0
  %664 = vmatpush1.msra.mxu0 0.0
  %665 = vmatprep.subr.mxu0 0.0
  %666 = vmatpush1.msra.mxu0 0.0
  %667 = vmatprep.subr.mxu0 0.0
  %668 = vmatpush1.msra.mxu0 0.0
  %669 = vmatprep.subr.mxu0 0.0
  %670 = vmatpush1.msra.mxu0 0.0
  %671 = vmatprep.subr.mxu0 0.0
  %672 = vmatpush1.msra.mxu0 0.0
  %673 = vmatprep.subr.mxu0 0.0
  %674 = vmatpush1.msra.mxu0 0.0
  %675 = vmatprep.subr.mxu0 0.0
  %676 = vmatpush1.msra.mxu0 0.0
  %677 = vmatprep.subr.mxu0 0.0
  %678 = vmatpush1.msra.mxu0 0.0
  %679 = vmatprep.subr.mxu0 0.0
  %680 = vmatpush1.msra.mxu0 0.0
  %681 = vmatprep.subr.mxu0 0.0
  %682 = vmatpush1.msra.mxu0 0.0
  %683 = vmatprep.subr.mxu0 0.0
  %684 = vmatpush1.msra.mxu0 0.0
  %685 = vmatprep.subr.mxu0 0.0
  %686 = vmatpush1.msra.mxu0 0.0
  %687 = vmatprep.subr.mxu0 0.0
  %688 = vmatpush1.msra.mxu0 0.0
  %689 = vmatprep.subr.mxu0 0.0
  %690 = vmatpush1.msra.mxu0 0.0
  %691 = vmatprep.subr.mxu0 0.0
  %692 = vmatpush1.msra.mxu0 0.0
  %693 = vmatprep.subr.mxu0 0.0
  %694 = vmatpush1.msra.mxu0 0.0
  %695 = vmatprep.subr.mxu0 0.0
  %696 = vmatpush1.msra.mxu0 0.0
  %697 = vmatprep.subr.mxu0 0.0
  %698 = vmatpush1.msra.mxu0 0.0
  %699 = vmatprep.subr.mxu0 0.0
  %700 = vmatpush1.msra.mxu0 0.0
  %701 = vmatprep.subr.mxu0 0.0
  %702 = vmatpush1.msra.mxu0 0.0
  %703 = vmatprep.subr.mxu0 0.0
  %704 = vmatpush1.msra.mxu0 0.0
  %705 = vmatprep.subr.mxu0 0.0
  %706 = vmatpush1.msra.mxu0 0.0
  %707 = vmatprep.subr.mxu0 0.0
  %708 = vmatpush1.msra.mxu0 0.0
  %709 = vmatprep.mubr.f32.mxu0 0.0
  %710 = vmatmul.mubr.f32.gmra.mrb[0].mxu0 %v643
  %v711 = vpop.f32.mrb[0].mxu0
  %v712 = vadd.f32 %v209, %v711
  %v713 = vpop.f32.mrb[0].mxu0
  %714 = vdwg.mxu0
  %715 = vst [vmem:[%s8 + $0x10] sm:$0xff] %v712
  %v716 = vpack.c.bf16 %v639, %v639
  %718 = vrot.lane.b32.xlu0 %v716, 64
  %v719 = vpop.permute.xlu0 %718
  %v721 = vsel %vm286, %v719, 0
  %723 = vmatprep.subr.bf16.mxu0 %v271
  %724 = vmatpush1.bf16.msra.mxu0 %v270
  %725 = vmatprep.subr.bf16.mxu0 %v273
  %726 = vmatpush1.bf16.msra.mxu0 %v272
  %727 = vmatprep.subr.bf16.mxu0 %v275
  %728 = vmatpush1.bf16.msra.mxu0 %v274
  %729 = vmatprep.subr.bf16.mxu0 %v277
  %730 = vmatpush1.bf16.msra.mxu0 %v276
  %731 = vmatprep.subr.bf16.mxu0 0
  %732 = vmatpush1.bf16.msra.mxu0 0
  %733 = vmatprep.subr.bf16.mxu0 0
  %734 = vmatpush1.bf16.msra.mxu0 0
  %735 = vmatprep.subr.bf16.mxu0 0
  %736 = vmatpush1.bf16.msra.mxu0 0
  %737 = vmatprep.subr.bf16.mxu0 0
  %738 = vmatpush1.bf16.msra.mxu0 0
  %739 = vmatprep.subr.bf16.mxu0 0
  %740 = vmatpush1.bf16.msra.mxu0 0
  %741 = vmatprep.subr.bf16.mxu0 0
  %742 = vmatpush1.bf16.msra.mxu0 0
  %743 = vmatprep.subr.bf16.mxu0 0
  %744 = vmatpush1.bf16.msra.mxu0 0
  %745 = vmatprep.subr.bf16.mxu0 0
  %746 = vmatpush1.bf16.msra.mxu0 0
  %747 = vmatprep.subr.bf16.mxu0 0
  %748 = vmatpush1.bf16.msra.mxu0 0
  %749 = vmatprep.subr.bf16.mxu0 0
  %750 = vmatpush1.bf16.msra.mxu0 0
  %751 = vmatprep.subr.bf16.mxu0 0
  %752 = vmatpush1.bf16.msra.mxu0 0
  %753 = vmatprep.subr.bf16.mxu0 0
  %754 = vmatpush1.bf16.msra.mxu0 0
  %755 = vmatprep.mubr.bf16.mxu0 0
  %756 = vmatmul.mubr.bf16.gmra.mrb[0].mxu0 %v721
  %v757 = vpop.f32.mrb[0].mxu0
  %v758 = vadd.f32 0.0, %v757
  %v759 = vpop.f32.mrb[0].mxu0
  %v760 = vadd.f32 0.0, %v759
  %v761 = vpop.f32.mrb[0].mxu0
  %v762 = vpop.f32.mrb[0].mxu0
  %763 = vdwg.mxu0
  %v764 = vadd.f32 %v170, %v758
  %v765 = vadd.f32 %v172, %v760
  %v766 = vmul.f32 %v764, 0.5
  %v767 = vmul.f32 %v765, 0.5
  %v768 = vtanh.pop %v766
  %v769 = vtanh.pop %v767
  %v770 = vmul.f32 %v768, 0.5
  %v771 = vmul.f32 %v769, 0.5
  %v772 = vadd.f32 %v770, 0.5
  %v773 = vadd.f32 %v771, 0.5
  %v774 = vtanh.pop %v765
  %v775 = vmul.f32 %v772, %v637
  %v776 = vmul.f32 %v772, %v774
  %778 = vrot.lane.b32.xlu0 %v776, 64
  %v779 = vpop.permute.xlu0 %778
  %v781 = vadd.f32 %v775, %v779
  %v782 = vtanh.pop %v781
  %v783 = vmul.f32 %v773, %v782
  %785 = vrot.lane.b32.xlu0 %v783, 32
  %v786 = vpop.permute.xlu0 %785
  %v787 = vsel %vm354, %v786, 0
  %789 = vmatprep.subr.mxu0 0.0
  %790 = vmatpush1.msra.mxu0 %v200
  %791 = vmatprep.subr.mxu0 0.0
  %792 = vmatpush1.msra.mxu0 %v201
  %793 = vmatprep.subr.mxu0 0.0
  %794 = vmatpush1.msra.mxu0 %v202
  %795 = vmatprep.subr.mxu0 0.0
  %796 = vmatpush1.msra.mxu0 %v203
  %797 = vmatprep.subr.mxu0 0.0
  %798 = vmatpush1.msra.mxu0 0.0
  %799 = vmatprep.subr.mxu0 0.0
  %800 = vmatpush1.msra.mxu0 0.0
  %801 = vmatprep.subr.mxu0 0.0
  %802 = vmatpush1.msra.mxu0 0.0
  %803 = vmatprep.subr.mxu0 0.0
  %804 = vmatpush1.msra.mxu0 0.0
  %805 = vmatprep.subr.mxu0 0.0
  %806 = vmatpush1.msra.mxu0 0.0
  %807 = vmatprep.subr.mxu0 0.0
  %808 = vmatpush1.msra.mxu0 0.0
  %809 = vmatprep.subr.mxu0 0.0
  %810 = vmatpush1.msra.mxu0 0.0
  %811 = vmatprep.subr.mxu0 0.0
  %812 = vmatpush1.msra.mxu0 0.0
  %813 = vmatprep.subr.mxu0 0.0
  %814 = vmatpush1.msra.mxu0 0.0
  %815 = vmatprep.subr.mxu0 0.0
  %816 = vmatpush1.msra.mxu0 0.0
  %817 = vmatprep.subr.mxu0 0.0
  %818 = vmatpush1.msra.mxu0 0.0
  %819 = vmatprep.subr.mxu0 0.0
  %820 = vmatpush1.msra.mxu0 0.0
  %821 = vmatprep.subr.mxu0 0.0
  %822 = vmatpush1.msra.mxu0 0.0
  %823 = vmatprep.subr.mxu0 0.0
  %824 = vmatpush1.msra.mxu0 0.0
  %825 = vmatprep.subr.mxu0 0.0
  %826 = vmatpush1.msra.mxu0 0.0
  %827 = vmatprep.subr.mxu0 0.0
  %828 = vmatpush1.msra.mxu0 0.0
  %829 = vmatprep.subr.mxu0 0.0
  %830 = vmatpush1.msra.mxu0 0.0
  %831 = vmatprep.subr.mxu0 0.0
  %832 = vmatpush1.msra.mxu0 0.0
  %833 = vmatprep.subr.mxu0 0.0
  %834 = vmatpush1.msra.mxu0 0.0
  %835 = vmatprep.subr.mxu0 0.0
  %836 = vmatpush1.msra.mxu0 0.0
  %837 = vmatprep.subr.mxu0 0.0
  %838 = vmatpush1.msra.mxu0 0.0
  %839 = vmatprep.subr.mxu0 0.0
  %840 = vmatpush1.msra.mxu0 0.0
  %841 = vmatprep.subr.mxu0 0.0
  %842 = vmatpush1.msra.mxu0 0.0
  %843 = vmatprep.subr.mxu0 0.0
  %844 = vmatpush1.msra.mxu0 0.0
  %845 = vmatprep.subr.mxu0 0.0
  %846 = vmatpush1.msra.mxu0 0.0
  %847 = vmatprep.subr.mxu0 0.0
  %848 = vmatpush1.msra.mxu0 0.0
  %849 = vmatprep.subr.mxu0 0.0
  %850 = vmatpush1.msra.mxu0 0.0
  %851 = vmatprep.subr.mxu0 0.0
  %852 = vmatpush1.msra.mxu0 0.0
  %853 = vmatprep.mubr.f32.mxu0 0.0
  %854 = vmatmul.mubr.f32.gmra.mrb[0].mxu0 %v787
  %v855 = vpop.f32.mrb[0].mxu0
  %v856 = vadd.f32 %v209, %v855
  %v857 = vpop.f32.mrb[0].mxu0
  %858 = vdwg.mxu0
  %859 = vst [vmem:[%s8 + $0x18] sm:$0xff] %v856
  %v860 = vpack.c.bf16 %v783, %v783
  %862 = vrot.lane.b32.xlu0 %v860, 64
  %v863 = vpop.permute.xlu0 %862
  %v865 = vsel %vm286, %v863, 0
  %867 = vmatprep.subr.bf16.mxu0 %v271
  %868 = vmatpush1.bf16.msra.mxu0 %v270
  %869 = vmatprep.subr.bf16.mxu0 %v273
  %870 = vmatpush1.bf16.msra.mxu0 %v272
  %871 = vmatprep.subr.bf16.mxu0 %v275
  %872 = vmatpush1.bf16.msra.mxu0 %v274
  %873 = vmatprep.subr.bf16.mxu0 %v277
  %874 = vmatpush1.bf16.msra.mxu0 %v276
  %875 = vmatprep.subr.bf16.mxu0 0
  %876 = vmatpush1.bf16.msra.mxu0 0
  %877 = vmatprep.subr.bf16.mxu0 0
  %878 = vmatpush1.bf16.msra.mxu0 0
  %879 = vmatprep.subr.bf16.mxu0 0
  %880 = vmatpush1.bf16.msra.mxu0 0
  %881 = vmatprep.subr.bf16.mxu0 0
  %882 = vmatpush1.bf16.msra.mxu0 0
  %883 = vmatprep.subr.bf16.mxu0 0
  %884 = vmatpush1.bf16.msra.mxu0 0
  %885 = vmatprep.subr.bf16.mxu0 0
  %886 = vmatpush1.bf16.msra.mxu0 0
  %887 = vmatprep.subr.bf16.mxu0 0
  %888 = vmatpush1.bf16.msra.mxu0 0
  %889 = vmatprep.subr.bf16.mxu0 0
  %890 = vmatpush1.bf16.msra.mxu0 0
  %891 = vmatprep.subr.bf16.mxu0 0
  %892 = vmatpush1.bf16.msra.mxu0 0
  %893 = vmatprep.subr.bf16.mxu0 0
  %894 = vmatpush1.bf16.msra.mxu0 0
  %895 = vmatprep.subr.bf16.mxu0 0
  %896 = vmatpush1.bf16.msra.mxu0 0
  %897 = vmatprep.subr.bf16.mxu0 0
  %898 = vmatpush1.bf16.msra.mxu0 0
  %899 = vmatprep.mubr.bf16.mxu0 0
  %900 = vmatmul.mubr.bf16.gmra.mrb[0].mxu0 %v865
  %v901 = vpop.f32.mrb[0].mxu0
  %v902 = vadd.f32 0.0, %v901
  %v903 = vpop.f32.mrb[0].mxu0
  %v904 = vadd.f32 0.0, %v903
  %v905 = vpop.f32.mrb[0].mxu0
  %v906 = vpop.f32.mrb[0].mxu0
  %907 = vdwg.mxu0
  %v908 = vadd.f32 %v176, %v902
  %v909 = vadd.f32 %v178, %v904
  %v910 = vmul.f32 %v908, 0.5
  %v911 = vmul.f32 %v909, 0.5
  %v912 = vtanh.pop %v910
  %v913 = vtanh.pop %v911
  %v914 = vmul.f32 %v912, 0.5
  %v915 = vmul.f32 %v913, 0.5
  %v916 = vadd.f32 %v914, 0.5
  %v917 = vadd.f32 %v915, 0.5
  %v918 = vtanh.pop %v909
  %v919 = vmul.f32 %v916, %v781
  %v920 = vmul.f32 %v916, %v918
  %922 = vrot.lane.b32.xlu0 %v920, 64
  %v923 = vpop.permute.xlu0 %922
  %v925 = vadd.f32 %v919, %v923
  %v926 = vtanh.pop %v925
  %v927 = vmul.f32 %v917, %v926
  %929 = vrot.lane.b32.xlu0 %v927, 32
  %v930 = vpop.permute.xlu0 %929
  %v931 = vsel %vm354, %v930, 0
  %933 = vmatprep.subr.mxu0 0.0
  %934 = vmatpush1.msra.mxu0 %v200
  %935 = vmatprep.subr.mxu0 0.0
  %936 = vmatpush1.msra.mxu0 %v201
  %937 = vmatprep.subr.mxu0 0.0
  %938 = vmatpush1.msra.mxu0 %v202
  %939 = vmatprep.subr.mxu0 0.0
  %940 = vmatpush1.msra.mxu0 %v203
  %941 = vmatprep.subr.mxu0 0.0
  %942 = vmatpush1.msra.mxu0 0.0
  %943 = vmatprep.subr.mxu0 0.0
  %944 = vmatpush1.msra.mxu0 0.0
  %945 = vmatprep.subr.mxu0 0.0
  %946 = vmatpush1.msra.mxu0 0.0
  %947 = vmatprep.subr.mxu0 0.0
  %948 = vmatpush1.msra.mxu0 0.0
  %949 = vmatprep.subr.mxu0 0.0
  %950 = vmatpush1.msra.mxu0 0.0
  %951 = vmatprep.subr.mxu0 0.0
  %952 = vmatpush1.msra.mxu0 0.0
  %953 = vmatprep.subr.mxu0 0.0
  %954 = vmatpush1.msra.mxu0 0.0
  %955 = vmatprep.subr.mxu0 0.0
  %956 = vmatpush1.msra.mxu0 0.0
  %957 = vmatprep.subr.mxu0 0.0
  %958 = vmatpush1.msra.mxu0 0.0
  %959 = vmatprep.subr.mxu0 0.0
  %960 = vmatpush1.msra.mxu0 0.0
  %961 = vmatprep.subr.mxu0 0.0
  %962 = vmatpush1.msra.mxu0 0.0
  %963 = vmatprep.subr.mxu0 0.0
  %964 = vmatpush1.msra.mxu0 0.0
  %965 = vmatprep.subr.mxu0 0.0
  %966 = vmatpush1.msra.mxu0 0.0
  %967 = vmatprep.subr.mxu0 0.0
  %968 = vmatpush1.msra.mxu0 0.0
  %969 = vmatprep.subr.mxu0 0.0
  %970 = vmatpush1.msra.mxu0 0.0
  %971 = vmatprep.subr.mxu0 0.0
  %972 = vmatpush1.msra.mxu0 0.0
  %973 = vmatprep.subr.mxu0 0.0
  %974 = vmatpush1.msra.mxu0 0.0
  %975 = vmatprep.subr.mxu0 0.0
  %976 = vmatpush1.msra.mxu0 0.0
  %977 = vmatprep.subr.mxu0 0.0
  %978 = vmatpush1.msra.mxu0 0.0
  %979 = vmatprep.subr.mxu0 0.0
  %980 = vmatpush1.msra.mxu0 0.0
  %981 = vmatprep.subr.mxu0 0.0
  %982 = vmatpush1.msra.mxu0 0.0
  %983 = vmatprep.subr.mxu0 0.0
  %984 = vmatpush1.msra.mxu0 0.0
  %985 = vmatprep.subr.mxu0 0.0
  %986 = vmatpush1.msra.mxu0 0.0
  %987 = vmatprep.subr.mxu0 0.0
  %988 = vmatpush1.msra.mxu0 0.0
  %989 = vmatprep.subr.mxu0 0.0
  %990 = vmatpush1.msra.mxu0 0.0
  %991 = vmatprep.subr.mxu0 0.0
  %992 = vmatpush1.msra.mxu0 0.0
  %993 = vmatprep.subr.mxu0 0.0
  %994 = vmatpush1.msra.mxu0 0.0
  %995 = vmatprep.subr.mxu0 0.0
  %996 = vmatpush1.msra.mxu0 0.0
  %997 = vmatprep.mubr.f32.mxu0 0.0
  %998 = vmatmul.mubr.f32.gmra.mrb[0].mxu0 %v931
  %v999 = vpop.f32.mrb[0].mxu0
  %v1000 = vadd.f32 %v209, %v999
  %v1001 = vpop.f32.mrb[0].mxu0
  %1002 = vdwg.mxu0
  %1003 = vst [vmem:[%s8 + $0x20] sm:$0xff] %v1000
  %v1004 = vpack.c.bf16 %v927, %v927
  %1006 = vrot.lane.b32.xlu0 %v1004, 64
  %v1007 = vpop.permute.xlu0 %1006
  %v1009 = vsel %vm286, %v1007, 0
  %1011 = vmatprep.subr.bf16.mxu0 %v271
  %1012 = vmatpush1.bf16.msra.mxu0 %v270
  %1013 = vmatprep.subr.bf16.mxu0 %v273
  %1014 = vmatpush1.bf16.msra.mxu0 %v272
  %1015 = vmatprep.subr.bf16.mxu0 %v275
  %1016 = vmatpush1.bf16.msra.mxu0 %v274
  %1017 = vmatprep.subr.bf16.mxu0 %v277
  %1018 = vmatpush1.bf16.msra.mxu0 %v276
  %1019 = vmatprep.subr.bf16.mxu0 0
  %1020 = vmatpush1.bf16.msra.mxu0 0
  %1021 = vmatprep.subr.bf16.mxu0 0
  %1022 = vmatpush1.bf16.msra.mxu0 0
  %1023 = vmatprep.subr.bf16.mxu0 0
  %1024 = vmatpush1.bf16.msra.mxu0 0
  %1025 = vmatprep.subr.bf16.mxu0 0
  %1026 = vmatpush1.bf16.msra.mxu0 0
  %1027 = vmatprep.subr.bf16.mxu0 0
  %1028 = vmatpush1.bf16.msra.mxu0 0
  %1029 = vmatprep.subr.bf16.mxu0 0
  %1030 = vmatpush1.bf16.msra.mxu0 0
  %1031 = vmatprep.subr.bf16.mxu0 0
  %1032 = vmatpush1.bf16.msra.mxu0 0
  %1033 = vmatprep.subr.bf16.mxu0 0
  %1034 = vmatpush1.bf16.msra.mxu0 0
  %1035 = vmatprep.subr.bf16.mxu0 0
  %1036 = vmatpush1.bf16.msra.mxu0 0
  %1037 = vmatprep.subr.bf16.mxu0 0
  %1038 = vmatpush1.bf16.msra.mxu0 0
  %1039 = vmatprep.subr.bf16.mxu0 0
  %1040 = vmatpush1.bf16.msra.mxu0 0
  %1041 = vmatprep.subr.bf16.mxu0 0
  %1042 = vmatpush1.bf16.msra.mxu0 0
  %1043 = vmatprep.mubr.bf16.mxu0 0
  %1044 = vmatmul.mubr.bf16.gmra.mrb[0].mxu0 %v1009
  %v1045 = vpop.f32.mrb[0].mxu0
  %v1046 = vadd.f32 0.0, %v1045
  %v1047 = vpop.f32.mrb[0].mxu0
  %v1048 = vadd.f32 0.0, %v1047
  %v1049 = vpop.f32.mrb[0].mxu0
  %v1050 = vpop.f32.mrb[0].mxu0
  %1051 = vdwg.mxu0
  %v1052 = vadd.f32 %v182, %v1046
  %v1053 = vadd.f32 %v184, %v1048
  %v1054 = vmul.f32 %v1052, 0.5
  %v1055 = vmul.f32 %v1053, 0.5
  %v1056 = vtanh.pop %v1054
  %v1057 = vtanh.pop %v1055
  %v1058 = vmul.f32 %v1056, 0.5
  %v1059 = vmul.f32 %v1057, 0.5
  %v1060 = vadd.f32 %v1058, 0.5
  %v1061 = vadd.f32 %v1059, 0.5
  %v1062 = vtanh.pop %v1053
  %v1063 = vmul.f32 %v1060, %v925
  %v1064 = vmul.f32 %v1060, %v1062
  %1066 = vrot.lane.b32.xlu0 %v1064, 64
  %v1067 = vpop.permute.xlu0 %1066
  %v1069 = vadd.f32 %v1063, %v1067
  %v1070 = vtanh.pop %v1069
  %v1071 = vmul.f32 %v1061, %v1070
  %1073 = vrot.lane.b32.xlu0 %v1071, 32
  %v1074 = vpop.permute.xlu0 %1073
  %v1075 = vsel %vm354, %v1074, 0
  %1077 = vmatprep.subr.mxu0 0.0
  %1078 = vmatpush1.msra.mxu0 %v200
  %1079 = vmatprep.subr.mxu0 0.0
  %1080 = vmatpush1.msra.mxu0 %v201
  %1081 = vmatprep.subr.mxu0 0.0
  %1082 = vmatpush1.msra.mxu0 %v202
  %1083 = vmatprep.subr.mxu0 0.0
  %1084 = vmatpush1.msra.mxu0 %v203
  %1085 = vmatprep.subr.mxu0 0.0
  %1086 = vmatpush1.msra.mxu0 0.0
  %1087 = vmatprep.subr.mxu0 0.0
  %1088 = vmatpush1.msra.mxu0 0.0
  %1089 = vmatprep.subr.mxu0 0.0
  %1090 = vmatpush1.msra.mxu0 0.0
  %1091 = vmatprep.subr.mxu0 0.0
  %1092 = vmatpush1.msra.mxu0 0.0
  %1093 = vmatprep.subr.mxu0 0.0
  %1094 = vmatpush1.msra.mxu0 0.0
  %1095 = vmatprep.subr.mxu0 0.0
  %1096 = vmatpush1.msra.mxu0 0.0
  %1097 = vmatprep.subr.mxu0 0.0
  %1098 = vmatpush1.msra.mxu0 0.0
  %1099 = vmatprep.subr.mxu0 0.0
  %1100 = vmatpush1.msra.mxu0 0.0
  %1101 = vmatprep.subr.mxu0 0.0
  %1102 = vmatpush1.msra.mxu0 0.0
  %1103 = vmatprep.subr.mxu0 0.0
  %1104 = vmatpush1.msra.mxu0 0.0
  %1105 = vmatprep.subr.mxu0 0.0
  %1106 = vmatpush1.msra.mxu0 0.0
  %1107 = vmatprep.subr.mxu0 0.0
  %1108 = vmatpush1.msra.mxu0 0.0
  %1109 = vmatprep.subr.mxu0 0.0
  %1110 = vmatpush1.msra.mxu0 0.0
  %1111 = vmatprep.subr.mxu0 0.0
  %1112 = vmatpush1.msra.mxu0 0.0
  %1113 = vmatprep.subr.mxu0 0.0
  %1114 = vmatpush1.msra.mxu0 0.0
  %1115 = vmatprep.subr.mxu0 0.0
  %1116 = vmatpush1.msra.mxu0 0.0
  %1117 = vmatprep.subr.mxu0 0.0
  %1118 = vmatpush1.msra.mxu0 0.0
  %1119 = vmatprep.subr.mxu0 0.0
  %1120 = vmatpush1.msra.mxu0 0.0
  %1121 = vmatprep.subr.mxu0 0.0
  %1122 = vmatpush1.msra.mxu0 0.0
  %1123 = vmatprep.subr.mxu0 0.0
  %1124 = vmatpush1.msra.mxu0 0.0
  %1125 = vmatprep.subr.mxu0 0.0
  %1126 = vmatpush1.msra.mxu0 0.0
  %1127 = vmatprep.subr.mxu0 0.0
  %1128 = vmatpush1.msra.mxu0 0.0
  %1129 = vmatprep.subr.mxu0 0.0
  %1130 = vmatpush1.msra.mxu0 0.0
  %1131 = vmatprep.subr.mxu0 0.0
  %1132 = vmatpush1.msra.mxu0 0.0
  %1133 = vmatprep.subr.mxu0 0.0
  %1134 = vmatpush1.msra.mxu0 0.0
  %1135 = vmatprep.subr.mxu0 0.0
  %1136 = vmatpush1.msra.mxu0 0.0
  %1137 = vmatprep.subr.mxu0 0.0
  %1138 = vmatpush1.msra.mxu0 0.0
  %1139 = vmatprep.subr.mxu0 0.0
  %1140 = vmatpush1.msra.mxu0 0.0
  %1141 = vmatprep.mubr.f32.mxu0 0.0
  %1142 = vmatmul.mubr.f32.gmra.mrb[0].mxu0 %v1075
  %v1143 = vpop.f32.mrb[0].mxu0
  %v1144 = vadd.f32 %v209, %v1143
  %v1145 = vpop.f32.mrb[0].mxu0
  %1146 = vdwg.mxu0
  %1147 = vst [vmem:[%s8 + $0x28] sm:$0xff] %v1144
  %v1148 = vpack.c.bf16 %v1071, %v1071
  %1150 = vrot.lane.b32.xlu0 %v1148, 64
  %v1151 = vpop.permute.xlu0 %1150
  %v1153 = vsel %vm286, %v1151, 0
  %1155 = vmatprep.subr.bf16.mxu0 %v271
  %1156 = vmatpush1.bf16.msra.mxu0 %v270
  %1157 = vmatprep.subr.bf16.mxu0 %v273
  %1158 = vmatpush1.bf16.msra.mxu0 %v272
  %1159 = vmatprep.subr.bf16.mxu0 %v275
  %1160 = vmatpush1.bf16.msra.mxu0 %v274
  %1161 = vmatprep.subr.bf16.mxu0 %v277
  %1162 = vmatpush1.bf16.msra.mxu0 %v276
  %1163 = vmatprep.subr.bf16.mxu0 0
  %1164 = vmatpush1.bf16.msra.mxu0 0
  %1165 = vmatprep.subr.bf16.mxu0 0
  %1166 = vmatpush1.bf16.msra.mxu0 0
  %1167 = vmatprep.subr.bf16.mxu0 0
  %1168 = vmatpush1.bf16.msra.mxu0 0
  %1169 = vmatprep.subr.bf16.mxu0 0
  %1170 = vmatpush1.bf16.msra.mxu0 0
  %1171 = vmatprep.subr.bf16.mxu0 0
  %1172 = vmatpush1.bf16.msra.mxu0 0
  %1173 = vmatprep.subr.bf16.mxu0 0
  %1174 = vmatpush1.bf16.msra.mxu0 0
  %1175 = vmatprep.subr.bf16.mxu0 0
  %1176 = vmatpush1.bf16.msra.mxu0 0
  %1177 = vmatprep.subr.bf16.mxu0 0
  %1178 = vmatpush1.bf16.msra.mxu0 0
  %1179 = vmatprep.subr.bf16.mxu0 0
  %1180 = vmatpush1.bf16.msra.mxu0 0
  %1181 = vmatprep.subr.bf16.mxu0 0
  %1182 = vmatpush1.bf16.msra.mxu0 0
  %1183 = vmatprep.subr.bf16.mxu0 0
  %1184 = vmatpush1.bf16.msra.mxu0 0
  %1185 = vmatprep.subr.bf16.mxu0 0
  %1186 = vmatpush1.bf16.msra.mxu0 0
  %1187 = vmatprep.mubr.bf16.mxu0 0
  %1188 = vmatmul.mubr.bf16.gmra.mrb[0].mxu0 %v1153
  %v1189 = vpop.f32.mrb[0].mxu0
  %v1190 = vadd.f32 0.0, %v1189
  %v1191 = vpop.f32.mrb[0].mxu0
  %v1192 = vadd.f32 0.0, %v1191
  %v1193 = vpop.f32.mrb[0].mxu0
  %v1194 = vpop.f32.mrb[0].mxu0
  %1195 = vdwg.mxu0
  %v1196 = vadd.f32 %v188, %v1190
  %v1197 = vadd.f32 %v190, %v1192
  %v1198 = vmul.f32 %v1196, 0.5
  %v1199 = vmul.f32 %v1197, 0.5
  %v1200 = vtanh.pop %v1198
  %v1201 = vtanh.pop %v1199
  %v1202 = vmul.f32 %v1200, 0.5
  %v1203 = vmul.f32 %v1201, 0.5
  %v1204 = vadd.f32 %v1202, 0.5
  %v1205 = vadd.f32 %v1203, 0.5
  %v1206 = vtanh.pop %v1197
  %v1207 = vmul.f32 %v1204, %v1069
  %v1208 = vmul.f32 %v1204, %v1206
  %1210 = vrot.lane.b32.xlu0 %v1208, 64
  %v1211 = vpop.permute.xlu0 %1210
  %v1213 = vadd.f32 %v1207, %v1211
  %v1214 = vtanh.pop %v1213
  %v1215 = vmul.f32 %v1205, %v1214
  %1217 = vrot.lane.b32.xlu0 %v1215, 32
  %v1218 = vpop.permute.xlu0 %1217
  %v1219 = vsel %vm354, %v1218, 0
  %1221 = vmatprep.subr.mxu0 0.0
  %1222 = vmatpush1.msra.mxu0 %v200
  %1223 = vmatprep.subr.mxu0 0.0
  %1224 = vmatpush1.msra.mxu0 %v201
  %1225 = vmatprep.subr.mxu0 0.0
  %1226 = vmatpush1.msra.mxu0 %v202
  %1227 = vmatprep.subr.mxu0 0.0
  %1228 = vmatpush1.msra.mxu0 %v203
  %1229 = vmatprep.subr.mxu0 0.0
  %1230 = vmatpush1.msra.mxu0 0.0
  %1231 = vmatprep.subr.mxu0 0.0
  %1232 = vmatpush1.msra.mxu0 0.0
  %1233 = vmatprep.subr.mxu0 0.0
  %1234 = vmatpush1.msra.mxu0 0.0
  %1235 = vmatprep.subr.mxu0 0.0
  %1236 = vmatpush1.msra.mxu0 0.0
  %1237 = vmatprep.subr.mxu0 0.0
  %1238 = vmatpush1.msra.mxu0 0.0
  %1239 = vmatprep.subr.mxu0 0.0
  %1240 = vmatpush1.msra.mxu0 0.0
  %1241 = vmatprep.subr.mxu0 0.0
  %1242 = vmatpush1.msra.mxu0 0.0
  %1243 = vmatprep.subr.mxu0 0.0
  %1244 = vmatpush1.msra.mxu0 0.0
  %1245 = vmatprep.subr.mxu0 0.0
  %1246 = vmatpush1.msra.mxu0 0.0
  %1247 = vmatprep.subr.mxu0 0.0
  %1248 = vmatpush1.msra.mxu0 0.0
  %1249 = vmatprep.subr.mxu0 0.0
  %1250 = vmatpush1.msra.mxu0 0.0
  %1251 = vmatprep.subr.mxu0 0.0
  %1252 = vmatpush1.msra.mxu0 0.0
  %1253 = vmatprep.subr.mxu0 0.0
  %1254 = vmatpush1.msra.mxu0 0.0
  %1255 = vmatprep.subr.mxu0 0.0
  %1256 = vmatpush1.msra.mxu0 0.0
  %1257 = vmatprep.subr.mxu0 0.0
  %1258 = vmatpush1.msra.mxu0 0.0
  %1259 = vmatprep.subr.mxu0 0.0
  %1260 = vmatpush1.msra.mxu0 0.0
  %1261 = vmatprep.subr.mxu0 0.0
  %1262 = vmatpush1.msra.mxu0 0.0
  %1263 = vmatprep.subr.mxu0 0.0
  %1264 = vmatpush1.msra.mxu0 0.0
  %1265 = vmatprep.subr.mxu0 0.0
  %1266 = vmatpush1.msra.mxu0 0.0
  %1267 = vmatprep.subr.mxu0 0.0
  %1268 = vmatpush1.msra.mxu0 0.0
  %1269 = vmatprep.subr.mxu0 0.0
  %1270 = vmatpush1.msra.mxu0 0.0
  %1271 = vmatprep.subr.mxu0 0.0
  %1272 = vmatpush1.msra.mxu0 0.0
  %1273 = vmatprep.subr.mxu0 0.0
  %1274 = vmatpush1.msra.mxu0 0.0
  %1275 = vmatprep.subr.mxu0 0.0
  %1276 = vmatpush1.msra.mxu0 0.0
  %1277 = vmatprep.subr.mxu0 0.0
  %1278 = vmatpush1.msra.mxu0 0.0
  %1279 = vmatprep.subr.mxu0 0.0
  %1280 = vmatpush1.msra.mxu0 0.0
  %1281 = vmatprep.subr.mxu0 0.0
  %1282 = vmatpush1.msra.mxu0 0.0
  %1283 = vmatprep.subr.mxu0 0.0
  %1284 = vmatpush1.msra.mxu0 0.0
  %1285 = vmatprep.mubr.f32.mxu0 0.0
  %1286 = vmatmul.mubr.f32.gmra.mrb[0].mxu0 %v1219
  %v1287 = vpop.f32.mrb[0].mxu0
  %v1288 = vadd.f32 %v209, %v1287
  %v1289 = vpop.f32.mrb[0].mxu0
  %1290 = vdwg.mxu0
  %1291 = vst [vmem:[%s8 + $0x30] sm:$0xff] %v1288
  %v1292 = vpack.c.bf16 %v1215, %v1215
  %v1293 = vld [vmem:[%s2] sm:$0x3]
  %v1295 = vlaneseq
  %v1296 = vshrl.u32 %v1295, 7
  %v1297 = vsub.s32 0, %v1296
  %v1298 = vrot.slane %v1293, %v1297
  %v1299 = vlaneseq
  %v1300 = vshrl.u32 %v1299, 7
  %v1301 = vsub.s32 1, %v1300
  %v1302 = vrot.slane %v1293, %v1301
  %1306 = vrot.lane.b32.xlu0 %v1292, 64
  %v1307 = vpop.permute.xlu0 %1306
  %v1309 = vsel %vm286, %v1307, 0
  %1311 = vmatprep.subr.bf16.mxu0 %v271
  %1312 = vmatpush1.bf16.msra.mxu0 %v270
  %1313 = vmatprep.subr.bf16.mxu0 %v273
  %1314 = vmatpush1.bf16.msra.mxu0 %v272
  %1315 = vmatprep.subr.bf16.mxu0 %v275
  %1316 = vmatpush1.bf16.msra.mxu0 %v274
  %1317 = vmatprep.subr.bf16.mxu0 %v277
  %1318 = vmatpush1.bf16.msra.mxu0 %v276
  %1319 = vmatprep.subr.bf16.mxu0 0
  %1320 = vmatpush1.bf16.msra.mxu0 0
  %1321 = vmatprep.subr.bf16.mxu0 0
  %1322 = vmatpush1.bf16.msra.mxu0 0
  %1323 = vmatprep.subr.bf16.mxu0 0
  %1324 = vmatpush1.bf16.msra.mxu0 0
  %1325 = vmatprep.subr.bf16.mxu0 0
  %1326 = vmatpush1.bf16.msra.mxu0 0
  %1327 = vmatprep.subr.bf16.mxu0 0
  %1328 = vmatpush1.bf16.msra.mxu0 0
  %1329 = vmatprep.subr.bf16.mxu0 0
  %1330 = vmatpush1.bf16.msra.mxu0 0
  %1331 = vmatprep.subr.bf16.mxu0 0
  %1332 = vmatpush1.bf16.msra.mxu0 0
  %1333 = vmatprep.subr.bf16.mxu0 0
  %1334 = vmatpush1.bf16.msra.mxu0 0
  %1335 = vmatprep.subr.bf16.mxu0 0
  %1336 = vmatpush1.bf16.msra.mxu0 0
  %1337 = vmatprep.subr.bf16.mxu0 0
  %1338 = vmatpush1.bf16.msra.mxu0 0
  %1339 = vmatprep.subr.bf16.mxu0 0
  %1340 = vmatpush1.bf16.msra.mxu0 0
  %1341 = vmatprep.subr.bf16.mxu0 0
  %1342 = vmatpush1.bf16.msra.mxu0 0
  %1343 = vmatprep.mubr.bf16.mxu0 0
  %1344 = vmatmul.mubr.bf16.gmra.mrb[0].mxu0 %v1309
  %v1345 = vpop.f32.mrb[0].mxu0
  %v1346 = vadd.f32 %v1298, %v1345
  %v1347 = vpop.f32.mrb[0].mxu0
  %v1348 = vadd.f32 %v1302, %v1347
  %v1349 = vpop.f32.mrb[0].mxu0
  %v1350 = vpop.f32.mrb[0].mxu0
  %1351 = vdwg.mxu0
  %v1352 = vmul.f32 %v1346, 0.5
  %v1353 = vtanh.pop %v1352
  %v1354 = vmul.f32 %v1353, 0.5
  %v1355 = vadd.f32 %v1354, 0.5
  %v1356 = vtanh.pop %v1348
  %v1357 = vmul.f32 %v1348, 0.5
  %v1358 = vtanh.pop %v1357
  %v1359 = vmul.f32 %v1358, 0.5
  %v1360 = vadd.f32 %v1359, 0.5
  %v1361 = vmul.f32 %v1355, %v1213
  %v1362 = vmul.f32 %v1355, %v1356
  %1364 = vrot.lane.b32.xlu0 %v1362, 64
  %v1365 = vpop.permute.xlu0 %1364
  %v1367 = vadd.f32 %v1361, %v1365
  %v1368 = vtanh.pop %v1367
  %v1369 = vmul.f32 %v1360, %v1368
  %1371 = vrot.lane.b32.xlu0 %v1369, 32
  %v1372 = vpop.permute.xlu0 %1371
  %v1373 = vsel %vm354, %v1372, 0
  %1375 = vmatprep.subr.mxu0 0.0
  %1376 = vmatpush1.msra.mxu0 %v200
  %1377 = vmatprep.subr.mxu0 0.0
  %1378 = vmatpush1.msra.mxu0 %v201
  %1379 = vmatprep.subr.mxu0 0.0
  %1380 = vmatpush1.msra.mxu0 %v202
  %1381 = vmatprep.subr.mxu0 0.0
  %1382 = vmatpush1.msra.mxu0 %v203
  %1383 = vmatprep.subr.mxu0 0.0
  %1384 = vmatpush1.msra.mxu0 0.0
  %1385 = vmatprep.subr.mxu0 0.0
  %1386 = vmatpush1.msra.mxu0 0.0
  %1387 = vmatprep.subr.mxu0 0.0
  %1388 = vmatpush1.msra.mxu0 0.0
  %1389 = vmatprep.subr.mxu0 0.0
  %1390 = vmatpush1.msra.mxu0 0.0
  %1391 = vmatprep.subr.mxu0 0.0
  %1392 = vmatpush1.msra.mxu0 0.0
  %1393 = vmatprep.subr.mxu0 0.0
  %1394 = vmatpush1.msra.mxu0 0.0
  %1395 = vmatprep.subr.mxu0 0.0
  %1396 = vmatpush1.msra.mxu0 0.0
  %1397 = vmatprep.subr.mxu0 0.0
  %1398 = vmatpush1.msra.mxu0 0.0
  %1399 = vmatprep.subr.mxu0 0.0
  %1400 = vmatpush1.msra.mxu0 0.0
  %1401 = vmatprep.subr.mxu0 0.0
  %1402 = vmatpush1.msra.mxu0 0.0
  %1403 = vmatprep.subr.mxu0 0.0
  %1404 = vmatpush1.msra.mxu0 0.0
  %1405 = vmatprep.subr.mxu0 0.0
  %1406 = vmatpush1.msra.mxu0 0.0
  %1407 = vmatprep.subr.mxu0 0.0
  %1408 = vmatpush1.msra.mxu0 0.0
  %1409 = vmatprep.subr.mxu0 0.0
  %1410 = vmatpush1.msra.mxu0 0.0
  %1411 = vmatprep.subr.mxu0 0.0
  %1412 = vmatpush1.msra.mxu0 0.0
  %1413 = vmatprep.subr.mxu0 0.0
  %1414 = vmatpush1.msra.mxu0 0.0
  %1415 = vmatprep.subr.mxu0 0.0
  %1416 = vmatpush1.msra.mxu0 0.0
  %1417 = vmatprep.subr.mxu0 0.0
  %1418 = vmatpush1.msra.mxu0 0.0
  %1419 = vmatprep.subr.mxu0 0.0
  %1420 = vmatpush1.msra.mxu0 0.0
  %1421 = vmatprep.subr.mxu0 0.0
  %1422 = vmatpush1.msra.mxu0 0.0
  %1423 = vmatprep.subr.mxu0 0.0
  %1424 = vmatpush1.msra.mxu0 0.0
  %1425 = vmatprep.subr.mxu0 0.0
  %1426 = vmatpush1.msra.mxu0 0.0
  %1427 = vmatprep.subr.mxu0 0.0
  %1428 = vmatpush1.msra.mxu0 0.0
  %1429 = vmatprep.subr.mxu0 0.0
  %1430 = vmatpush1.msra.mxu0 0.0
  %1431 = vmatprep.subr.mxu0 0.0
  %1432 = vmatpush1.msra.mxu0 0.0
  %1433 = vmatprep.subr.mxu0 0.0
  %1434 = vmatpush1.msra.mxu0 0.0
  %1435 = vmatprep.subr.mxu0 0.0
  %1436 = vmatpush1.msra.mxu0 0.0
  %1437 = vmatprep.subr.mxu0 0.0
  %1438 = vmatpush1.msra.mxu0 0.0
  %1439 = vmatprep.mubr.f32.mxu0 0.0
  %1440 = vmatmul.mubr.f32.gmra.mrb[0].mxu0 %v1373
  %v1441 = vpop.f32.mrb[0].mxu0
  %v1442 = vadd.f32 %v209, %v1441
  %v1443 = vpop.f32.mrb[0].mxu0
  %1444 = vdwg.mxu0
  %1445 = vst [vmem:[%s8 + $0x38] sm:$0xff] %v1442
  %v1446 = vld [vmem:[%s8] sm:$0xff]
  %v1447 = vld [vmem:[%s8 + $0x8] sm:$0xff]
  %v1448 = vld [vmem:[%s8 + $0x10] sm:$0xff]
  %v1449 = vld [vmem:[%s8 + $0x18] sm:$0xff]
  %v1450 = vld [vmem:[%s8 + $0x20] sm:$0xff]
  %v1451 = vld [vmem:[%s8 + $0x28] sm:$0xff]
  %v1452 = vld [vmem:[%s8 + $0x30] sm:$0xff]
  %v1453 = vld [vmem:[%s8 + $0x38] sm:$0xff]
  %v1454 = vlaneseq
  %v1455 = vshrl.u32 %v1454, 7
  %v1456 = vadd.s32 %v1455, 8
  %v1457 = vadd.s32 %v1455, 16
  %v1458 = vadd.s32 %v1455, 24
  %v1459 = vadd.s32 %v1455, 32
  %v1460 = vadd.s32 %v1455, 40
  %v1461 = vadd.s32 %v1455, 48
  %v1462 = vadd.s32 %v1455, 56
  %vm1463 = vcmp.lt.s32.totalorder %v1455, 0
  %v1464 = vsub.s32 0, %v1455
  %v1465 = vsel %vm1463, %v1464, %v1455
  %v1466 = vshrl.u32 %v1465, 3
  %v1467 = vand.u32 %v1465, 7
  %v1468 = vsub.s32 0, %v1467
  %v1469 = vsel %vm1463, %v1468, %v1467
  %vm1470 = vcmp.lt.s32.totalorder %v1456, 0
  %v1471 = vsub.s32 0, %v1456
  %v1472 = vsel %vm1470, %v1471, %v1456
  %v1473 = vshrl.u32 %v1472, 3
  %v1474 = vand.u32 %v1472, 7
  %v1475 = vsub.s32 0, %v1474
  %v1476 = vsel %vm1470, %v1475, %v1474
  %vm1477 = vcmp.lt.s32.totalorder %v1457, 0
  %v1478 = vsub.s32 0, %v1457
  %v1479 = vsel %vm1477, %v1478, %v1457
  %v1480 = vshrl.u32 %v1479, 3
  %v1481 = vand.u32 %v1479, 7
  %v1482 = vsub.s32 0, %v1481
  %v1483 = vsel %vm1477, %v1482, %v1481
  %vm1484 = vcmp.lt.s32.totalorder %v1458, 0
  %v1485 = vsub.s32 0, %v1458
  %v1486 = vsel %vm1484, %v1485, %v1458
  %v1487 = vshrl.u32 %v1486, 3
  %v1488 = vand.u32 %v1486, 7
  %v1489 = vsub.s32 0, %v1488
  %v1490 = vsel %vm1484, %v1489, %v1488
  %vm1491 = vcmp.lt.s32.totalorder %v1459, 0
  %v1492 = vsub.s32 0, %v1459
  %v1493 = vsel %vm1491, %v1492, %v1459
  %v1494 = vshrl.u32 %v1493, 3
  %v1495 = vand.u32 %v1493, 7
  %v1496 = vsub.s32 0, %v1495
  %v1497 = vsel %vm1491, %v1496, %v1495
  %vm1498 = vcmp.lt.s32.totalorder %v1460, 0
  %v1499 = vsub.s32 0, %v1460
  %v1500 = vsel %vm1498, %v1499, %v1460
  %v1501 = vshrl.u32 %v1500, 3
  %v1502 = vand.u32 %v1500, 7
  %v1503 = vsub.s32 0, %v1502
  %v1504 = vsel %vm1498, %v1503, %v1502
  %vm1505 = vcmp.lt.s32.totalorder %v1461, 0
  %v1506 = vsub.s32 0, %v1461
  %v1507 = vsel %vm1505, %v1506, %v1461
  %v1508 = vshrl.u32 %v1507, 3
  %v1509 = vand.u32 %v1507, 7
  %v1510 = vsub.s32 0, %v1509
  %v1511 = vsel %vm1505, %v1510, %v1509
  %vm1512 = vcmp.lt.s32.totalorder %v1462, 0
  %v1513 = vsub.s32 0, %v1462
  %v1514 = vsel %vm1512, %v1513, %v1462
  %v1515 = vshrl.u32 %v1514, 3
  %v1516 = vand.u32 %v1514, 7
  %v1517 = vsub.s32 0, %v1516
  %v1518 = vsel %vm1512, %v1517, %v1516
  %vm1519 = vcmp.ne.s32.totalorder %v1469, 0
  %vm1520 = vcmp.ne.s32.totalorder %v1476, 0
  %vm1521 = vcmp.ne.s32.totalorder %v1483, 0
  %vm1522 = vcmp.ne.s32.totalorder %v1490, 0
  %vm1523 = vcmp.ne.s32.totalorder %v1497, 0
  %vm1524 = vcmp.ne.s32.totalorder %v1504, 0
  %vm1525 = vcmp.ne.s32.totalorder %v1511, 0
  %vm1526 = vcmp.ne.s32.totalorder %v1518, 0
  %vm1527 = vcmp.lt.s32.totalorder %v1469, 0
  %vm1528 = vcmp.lt.s32.totalorder %v1476, 0
  %vm1529 = vcmp.lt.s32.totalorder %v1483, 0
  %vm1530 = vcmp.lt.s32.totalorder %v1490, 0
  %vm1531 = vcmp.lt.s32.totalorder %v1497, 0
  %vm1532 = vcmp.lt.s32.totalorder %v1504, 0
  %vm1533 = vcmp.lt.s32.totalorder %v1511, 0
  %vm1534 = vcmp.lt.s32.totalorder %v1518, 0
  %vm1535 = vmand %vm1527, %vm1519
  %vm1536 = vmand %vm1528, %vm1520
  %vm1537 = vmand %vm1529, %vm1521
  %vm1538 = vmand %vm1530, %vm1522
  %vm1539 = vmand %vm1531, %vm1523
  %vm1540 = vmand %vm1532, %vm1524
  %vm1541 = vmand %vm1533, %vm1525
  %vm1542 = vmand %vm1534, %vm1526
  %v1543 = vadd.s32 %v1469, 8
  %v1544 = vadd.s32 %v1476, 8
  %v1545 = vadd.s32 %v1483, 8
  %v1546 = vadd.s32 %v1490, 8
  %v1547 = vadd.s32 %v1497, 8
  %v1548 = vadd.s32 %v1504, 8
  %v1549 = vadd.s32 %v1511, 8
  %v1550 = vadd.s32 %v1518, 8
  %v1551 = vsel %vm1535, %v1543, %v1469
  %v1552 = vsel %vm1536, %v1544, %v1476
  %v1553 = vsel %vm1537, %v1545, %v1483
  %v1554 = vsel %vm1538, %v1546, %v1490
  %v1555 = vsel %vm1539, %v1547, %v1497
  %v1556 = vsel %vm1540, %v1548, %v1504
  %v1557 = vsel %vm1541, %v1549, %v1511
  %v1558 = vsel %vm1542, %v1550, %v1518
  %vm1559 = vcmp.lt.s32.totalorder %v1551, 4
  %vm1560 = vcmp.lt.s32.totalorder %v1552, 4
  %vm1561 = vcmp.lt.s32.totalorder %v1553, 4
  %vm1562 = vcmp.lt.s32.totalorder %v1554, 4
  %vm1563 = vcmp.lt.s32.totalorder %v1555, 4
  %vm1564 = vcmp.lt.s32.totalorder %v1556, 4
  %vm1565 = vcmp.lt.s32.totalorder %v1557, 4
  %vm1566 = vcmp.lt.s32.totalorder %v1558, 4
  %v1567 = vsel %vm1559, 1, 0
  %v1568 = vsel %vm1560, 1, 0
  %v1569 = vsel %vm1561, 1, 0
  %v1570 = vsel %vm1562, 1, 0
  %v1571 = vsel %vm1563, 1, 0
  %v1572 = vsel %vm1564, 1, 0
  %v1573 = vsel %vm1565, 1, 0
  %v1574 = vsel %vm1566, 1, 0
  %v1575 = vcvt.s32.f32 %v1567
  %v1576 = vcvt.s32.f32 %v1568
  %v1577 = vcvt.s32.f32 %v1569
  %v1578 = vcvt.s32.f32 %v1570
  %v1579 = vcvt.s32.f32 %v1571
  %v1580 = vcvt.s32.f32 %v1572
  %v1581 = vcvt.s32.f32 %v1573
  %v1582 = vcvt.s32.f32 %v1574
  %v1583 = vmul.f32 %v1446, %v1575
  %v1584 = vmul.f32 %v1447, %v1576
  %v1585 = vmul.f32 %v1448, %v1577
  %v1586 = vmul.f32 %v1449, %v1578
  %v1587 = vmul.f32 %v1450, %v1579
  %v1588 = vmul.f32 %v1451, %v1580
  %v1589 = vmul.f32 %v1452, %v1581
  %v1590 = vmul.f32 %v1453, %v1582
  %v1591 = vadd.f32 %v1583, %v1584
  %v1592 = vadd.f32 %v1591, %v1585
  %v1593 = vadd.f32 %v1592, %v1586
  %v1594 = vadd.f32 %v1593, %v1587
  %v1595 = vadd.f32 %v1594, %v1588
  %v1596 = vadd.f32 %v1595, %v1589
  %v1597 = vadd.f32 %v1596, %v1590
  %v1598 = vrot.slane %v1597, 4
  %v1599 = vadd.f32 %v1597, %v1598
  %v1600 = vrot.slane %v1599, 2
  %v1601 = vadd.f32 %v1599, %v1600
  %v1602 = vrot.slane %v1601, 1
  %v1603 = vadd.f32 %v1601, %v1602
  %v1604 = vrcp.pop 32.0
  %v1605 = vmul.f32 %v1603, %v1604
  %v1606 = vsub.f32 %v1446, %v1605
  %v1607 = vsub.f32 %v1447, %v1605
  %v1608 = vsub.f32 %v1448, %v1605
  %v1609 = vsub.f32 %v1449, %v1605
  %v1610 = vsub.f32 %v1450, %v1605
  %v1611 = vsub.f32 %v1451, %v1605
  %v1612 = vsub.f32 %v1452, %v1605
  %v1613 = vsub.f32 %v1453, %v1605
  %v1614 = vmul.f32 %v1606, %v1575
  %v1615 = vmul.f32 %v1607, %v1576
  %v1616 = vmul.f32 %v1608, %v1577
  %v1617 = vmul.f32 %v1609, %v1578
  %v1618 = vmul.f32 %v1610, %v1579
  %v1619 = vmul.f32 %v1611, %v1580
  %v1620 = vmul.f32 %v1612, %v1581
  %v1621 = vmul.f32 %v1613, %v1582
  %v1622 = vmul.f32 %v1614, %v1614
  %v1623 = vmul.f32 %v1615, %v1615
  %v1624 = vmul.f32 %v1616, %v1616
  %v1625 = vmul.f32 %v1617, %v1617
  %v1626 = vmul.f32 %v1618, %v1618
  %v1627 = vmul.f32 %v1619, %v1619
  %v1628 = vmul.f32 %v1620, %v1620
  %v1629 = vmul.f32 %v1621, %v1621
  %v1630 = vadd.f32 %v1622, %v1623
  %v1631 = vadd.f32 %v1630, %v1624
  %v1632 = vadd.f32 %v1631, %v1625
  %v1633 = vadd.f32 %v1632, %v1626
  %v1634 = vadd.f32 %v1633, %v1627
  %v1635 = vadd.f32 %v1634, %v1628
  %v1636 = vadd.f32 %v1635, %v1629
  %v1637 = vrot.slane %v1636, 4
  %v1638 = vadd.f32 %v1636, %v1637
  %v1639 = vrot.slane %v1638, 2
  %v1640 = vadd.f32 %v1638, %v1639
  %v1641 = vrot.slane %v1640, 1
  %v1642 = vadd.f32 %v1640, %v1641
  %v1643 = vmul.f32 %v1642, %v1604
  %v1644 = vadd.f32 %v1643, 1e-05
  %v1645 = vrsqrt.pop %v1644
  %v1646 = vmul.f32 %v1606, %v1645
  %v1647 = vmul.f32 %v1607, %v1645
  %v1648 = vmul.f32 %v1608, %v1645
  %v1649 = vmul.f32 %v1609, %v1645
  %v1650 = vmul.f32 %v1610, %v1645
  %v1651 = vmul.f32 %v1611, %v1645
  %v1652 = vmul.f32 %v1612, %v1645
  %v1653 = vmul.f32 %v1613, %v1645
  %v1654 = vld [vmem:[%s6] sm:$0x1]
  %v1656 = vlaneseq
  %v1657 = vshrl.u32 %v1656, 7
  %v1658 = vsub.s32 0, %v1657
  %v1659 = vrot.slane %v1654, %v1658
  %v1661 = vmul.f32 %v1646, %v1659
  %v1662 = vmul.f32 %v1647, %v1659
  %v1663 = vmul.f32 %v1648, %v1659
  %v1664 = vmul.f32 %v1649, %v1659
  %v1665 = vmul.f32 %v1650, %v1659
  %v1666 = vmul.f32 %v1651, %v1659
  %v1667 = vmul.f32 %v1652, %v1659
  %v1668 = vmul.f32 %v1653, %v1659
  %v1669 = vld [vmem:[%s7] sm:$0x1]
  %v1671 = vlaneseq
  %v1672 = vshrl.u32 %v1671, 7
  %v1673 = vsub.s32 0, %v1672
  %v1674 = vrot.slane %v1669, %v1673
  %v1676 = vadd.f32 %v1661, %v1674
  %v1677 = vadd.f32 %v1662, %v1674
  %v1678 = vadd.f32 %v1663, %v1674
  %v1679 = vadd.f32 %v1664, %v1674
  %v1680 = vadd.f32 %v1665, %v1674
  %v1681 = vadd.f32 %v1666, %v1674
  %v1682 = vadd.f32 %v1667, %v1674
  %v1683 = vadd.f32 %v1668, %v1674
  %v1684 = vmax.f32 %v1676, 0.0
  %v1685 = vmax.f32 %v1677, 0.0
  %v1686 = vmax.f32 %v1678, 0.0
  %v1687 = vmax.f32 %v1679, 0.0
  %v1688 = vmax.f32 %v1680, 0.0
  %v1689 = vmax.f32 %v1681, 0.0
  %v1690 = vmax.f32 %v1682, 0.0
  %v1691 = vmax.f32 %v1683, 0.0
  %1692 = vst [vmem:[%s8] sm:$0xff] %v1684
  %1693 = vst [vmem:[%s8 + $0x8] sm:$0xff] %v1685
  %1694 = vst [vmem:[%s8 + $0x10] sm:$0xff] %v1686
  %1695 = vst [vmem:[%s8 + $0x18] sm:$0xff] %v1687
  %1696 = vst [vmem:[%s8 + $0x20] sm:$0xff] %v1688
  %1697 = vst [vmem:[%s8 + $0x28] sm:$0xff] %v1689
  %1698 = vst [vmem:[%s8 + $0x30] sm:$0xff] %v1690
  %1699 = vst [vmem:[%s8 + $0x38] sm:$0xff] %v1691
  // Predicated region
  $region34: #{lstm_model_forward.1} parent=0 // pred_check
    _
  $region35: #{lstm_model_forward.1} parent=0 // pred_check_branch
    %1701 = sbr.rel (0) target = $region37
  $region36: #{lstm_model_forward.1} parent=0 // pred_region
    _
  $region37: #{lstm_model_forward.1} parent=0 // pred_fallthru
    _
  // Predicated region
  $region38: #{lstm_model_forward.1} parent=0 // pred_check
    _
  $region39: #{lstm_model_forward.1} parent=0 // pred_check_branch
    %1703 = sbr.rel (0) target = $region41
  $region40: #{lstm_model_forward.1} parent=0 // pred_region
    _
  $region41: #{lstm_model_forward.1} parent=0 // pred_fallthru
    _

</llo_original>
